<compile_context>
chip_gen: v7x
topology: tpu7x:2x2x1
jax: 0.10.0
libtpu: 0.0.40
codegen_flags: <defaults>
</compile_context>

<pallas_src>
import functools
import math

import jax
import jax.numpy as jnp
import numpy as np
from jax.experimental import pallas as pl
from jax.experimental.pallas import tpu as pltpu

_EPS = 1e-5
_INV_SQRT2 = 1.0 / math.sqrt(2.0)


def _gelu(x):
    # exact (erf) GELU, matching torch.nn.GELU() default
    return 0.5 * x * (1.0 + jax.lax.erf(x * _INV_SQRT2))


# ----------------------------------------------------------------------------
# Small helpers
# ----------------------------------------------------------------------------
def _pick_block_n(n, rows_per_image, target_rows=512):
    """Largest divisor of n whose stacked row count stays <= target_rows."""
    best = 1
    for cand in range(1, n + 1):
        if n % cand == 0 and cand * rows_per_image <= max(target_rows,
                                                          rows_per_image):
            best = cand
    return best


def _vmem_limit_bytes(sized):
    """Scoped-VMEM limit derived from the per-step block sizes: ~2x for the
    double-buffered pipeline copies plus headroom for f32 temporaries, clamped
    to 64 MiB so it is valid on v7x as well as v5e/v6e (128 MiB)."""
    need = 0
    for shape, dtype in sized:
        need += int(np.prod(shape)) * jnp.dtype(dtype).itemsize
    return int(min(max(4 * need, 8 << 20), 64 << 20))


# ----------------------------------------------------------------------------
# Kernel A: per-column (sum, sum-of-squares) partials, one block per grid step
# (reduced with a tiny XLA sum outside) so the grid stays "parallel".
# ----------------------------------------------------------------------------
def _colsum_kernel(x_ref, o_ref):
    x = x_ref[...].astype(jnp.float32)                     # (rows, C)
    s = jnp.sum(x, axis=0, keepdims=True)
    sq = jnp.sum(x * x, axis=0, keepdims=True)
    o_ref[0] = jnp.concatenate([s, sq], axis=0)            # (2, C)


def column_sums(x2d, rows_per_step):
    rows, c = x2d.shape
    steps = rows // rows_per_step
    partials = pl.pallas_call(
        _colsum_kernel,
        out_shape=jax.ShapeDtypeStruct((steps, 2, c), jnp.float32),
        grid=(steps,),
        in_specs=[pl.BlockSpec((rows_per_step, c), lambda i: (i, 0))],
        out_specs=pl.BlockSpec((1, 2, c), lambda i: (i, 0, 0)),
        compiler_params=pltpu.CompilerParams(
            dimension_semantics=("parallel",)),
    )(x2d)
    return jnp.sum(partials, axis=0)                       # (2, C)


def _bn_scale_shift(col_sums, n_rows, channels, gamma, beta):
    """Fold (2, W*C) column sums into tiled per-channel scale/shift (2, W*C)."""
    wcols = col_sums.shape[1] // channels
    per_ch = col_sums.reshape(2, wcols, channels).sum(axis=1)        # (2, C)
    count = n_rows * wcols
    mean = per_ch[0] / count
    var = jnp.maximum(per_ch[1] / count - mean * mean, 0.0)          # biased
    scale = (gamma * jax.lax.rsqrt(var + _EPS)).astype(jnp.float32)
    shift = (beta - mean * scale).astype(jnp.float32)
    return jnp.stack([jnp.tile(scale, wcols), jnp.tile(shift, wcols)], axis=0)


# ----------------------------------------------------------------------------
# Static operators built in the wrapper (numpy / tiny XLA, once per trace).
# ----------------------------------------------------------------------------
def _upsample_matrix(n_in, n_out):
    """nn.Upsample(scale_factor=2, bilinear, align_corners=True) as a dense
    (n_out, n_in) interpolation matrix."""
    m = np.zeros((n_out, n_in), np.float64)
    if n_in == 1:
        m[:, 0] = 1.0
    else:
        coord = np.arange(n_out) * (n_in - 1) / (n_out - 1)
        i0 = np.clip(np.floor(coord).astype(np.int64), 0, n_in - 1)
        i1 = np.minimum(i0 + 1, n_in - 1)
        frac = coord - i0
        m[np.arange(n_out), i0] += 1.0 - frac
        m[np.arange(n_out), i1] += frac
    return m.astype(np.float32)


def _row_ops(uh, block_n):
    """Left operators L_kh = kron(I_block_n, S_kh @ Uh): row upsample with the
    conv1 vertical tap (zero-padded row shift) folded in.  (3, B*H2, B*H)."""
    h2_, h_ = uh.shape
    l = np.zeros((3, h2_, h_), np.float32)
    for kh in range(3):
        lo = max(0, 1 - kh)
        hi = min(h2_, h2_ + 1 - kh)
        l[kh, lo:hi, :] = uh[lo + kh - 1:hi + kh - 1, :]
    eye = np.eye(block_n, dtype=np.float32)
    lb = np.einsum("krs,bc->kbrcs", l, eye)
    return lb.reshape(3, block_n * h2_, block_n * h_)


def _up_conv_right_ops(w_oihw, uw):
    """Right operators R_kh (3, W*Cin, W2*Cout): width upsample + conv1
    horizontal taps + channel mixing folded together (built with jnp because
    the conv weights may be traced)."""
    w2_, w_ = uw.shape
    cout, cin = int(w_oihw.shape[0]), int(w_oihw.shape[1])
    uw_ext = np.zeros((w2_ + 2, w_), np.float32)           # zero halo cols
    uw_ext[1:w2_ + 1] = uw
    p = np.arange(w2_)[:, None]
    kw = np.arange(3)[None, :]
    t = jnp.asarray(uw_ext[p + kw, :])                     # (W2, 3, W)
    r = jnp.einsum("oikl,plw->kwipo", w_oihw.astype(jnp.float32), t)
    return r.reshape(3, w_ * cin, w2_ * cout)


def _conv_right_ops(w_oihw, w_out):
    """Conv2 vertical-tap operators A_kh (3, W*Cin, W*Cout): horizontal taps +
    channel mixing, restricted to real columns (width zero-halo encoded)."""
    cout, cin = int(w_oihw.shape[0]), int(w_oihw.shape[1])
    q = np.arange(w_out)[:, None, None]
    p = np.arange(w_out)[None, :, None]
    kw = np.arange(3)[None, None, :]
    t = jnp.asarray((q == p + kw - 1).astype(np.float32))  # (W, W, 3)
    a = jnp.einsum("oikl,qpl->kqipo", w_oihw.astype(jnp.float32), t)
    return a.reshape(3, w_out * cin, w_out * cout)


# ----------------------------------------------------------------------------
# Kernel B: fused BN1(apply) + GELU + bilinear x2 + conv1 + bias, plus the
# per-step BN2 column-sum partials.  block_n images stacked per grid step;
# everything stays in VMEM; no pads/concats; bf16 MXU operands, f32 accum.
# ----------------------------------------------------------------------------
def _bn_gelu_up_conv_kernel(x_ref, ss_ref, l_ref, r_ref, b_ref, y_ref, cs_ref):
    x = x_ref[...].astype(jnp.float32)                     # (B*H, W*Cin)
    ss = ss_ref[...]
    g = _gelu(x * ss[0:1, :] + ss[1:2, :]).astype(jnp.bfloat16)
    rows_out = l_ref.shape[1]
    out_cols = r_ref.shape[2]
    acc = jnp.zeros((rows_out, out_cols), jnp.float32)
    for kh in range(3):                                    # static unroll
        t = jnp.dot(l_ref[kh], g, preferred_element_type=jnp.float32)
        acc = acc + jnp.dot(t.astype(jnp.bfloat16), r_ref[kh],
                            preferred_element_type=jnp.float32)
    acc = acc + b_ref[...]
    y_q = acc.astype(y_ref.dtype)
    y_ref[...] = y_q
    # BN2 batch-statistics partials for this step, computed on the exact value
    # kernel C will see, accumulated in f32, reduced over steps outside.
    yf = y_q.astype(jnp.float32)
    s = jnp.sum(yf, axis=0, keepdims=True)
    sq = jnp.sum(yf * yf, axis=0, keepdims=True)
    cs_ref[0] = jnp.concatenate([s, sq], axis=0)


def fused_bn_gelu_up_conv(x2d, ss, l_ops, r_ops, bias_row, *, rows_in,
                          rows_out, mid_dtype):
    total_rows, in_cols = x2d.shape
    steps = total_rows // rows_in
    out_cols = r_ops.shape[2]
    blocks = [((rows_in, in_cols), x2d.dtype), (ss.shape, ss.dtype),
              (l_ops.shape, l_ops.dtype), (r_ops.shape, r_ops.dtype),
              (bias_row.shape, bias_row.dtype),
              ((rows_out, out_cols), mid_dtype),
              ((rows_out, out_cols), jnp.float32),          # f32 accumulator
              ((1, 2, out_cols), jnp.float32)]
    y1, cs = pl.pallas_call(
        _bn_gelu_up_conv_kernel,
        out_shape=(jax.ShapeDtypeStruct((steps * rows_out, out_cols),
                                        mid_dtype),
                   jax.ShapeDtypeStruct((steps, 2, out_cols), jnp.float32)),
        grid=(steps,),
        in_specs=[
            pl.BlockSpec((rows_in, in_cols), lambda i: (i, 0)),
            pl.BlockSpec(ss.shape, lambda i: (0, 0)),
            pl.BlockSpec(l_ops.shape, lambda i: (0, 0, 0)),
            pl.BlockSpec(r_ops.shape, lambda i: (0, 0, 0)),
            pl.BlockSpec(bias_row.shape, lambda i: (0, 0)),
        ],
        out_specs=(pl.BlockSpec((rows_out, out_cols), lambda i: (i, 0)),
                   pl.BlockSpec((1, 2, out_cols), lambda i: (i, 0, 0))),
        compiler_params=pltpu.CompilerParams(
            dimension_semantics=("parallel",),
            vmem_limit_bytes=_vmem_limit_bytes(blocks)),
    )(x2d, ss, l_ops, r_ops, bias_row)
    return y1, jnp.sum(cs, axis=0)


# ----------------------------------------------------------------------------
# Kernel C: fused BN2(apply) + GELU + conv2 + bias.  The 1-row vertical halo
# lives in a VMEM scratch (single store, three shifted reads); per-image
# boundaries inside the stacked block are masked with a static iota select.
# ----------------------------------------------------------------------------
def _bn_gelu_conv_kernel(y_ref, ss_ref, a_ref, b_ref, o_ref, pad_ref, *,
                         h_img):
    m = y_ref.shape[0]
    y = y_ref[...].astype(jnp.float32)                     # (B*H2, W2*Cmid)
    ss = ss_ref[...]
    g = _gelu(y * ss[0:1, :] + ss[1:2, :])
    gb = g.astype(jnp.bfloat16)
    pad_ref[1:m + 1, :] = g                                # single halo store
    ridx = jax.lax.broadcasted_iota(jnp.int32, (m, 1), 0)
    acc = jnp.dot(gb, a_ref[1], preferred_element_type=jnp.float32)
    top = jnp.where((ridx % h_img) == 0, 0.0, pad_ref[0:m, :])
    acc = acc + jnp.dot(top.astype(jnp.bfloat16), a_ref[0],
                        preferred_element_type=jnp.float32)
    bot = jnp.where((ridx % h_img) == h_img - 1, 0.0, pad_ref[2:m + 2, :])
    acc = acc + jnp.dot(bot.astype(jnp.bfloat16), a_ref[2],
                        preferred_element_type=jnp.float32)
    acc = acc + b_ref[...]
    o_ref[...] = acc.astype(o_ref.dtype)


def fused_bn_gelu_conv(y1, ss, a_ops, bias_row, *, rows_blk, h_img, out_dtype):
    total_rows, in_cols = y1.shape
    steps = total_rows // rows_blk
    out_cols = a_ops.shape[2]
    blocks = [((rows_blk, in_cols), y1.dtype), (ss.shape, ss.dtype),
              (a_ops.shape, a_ops.dtype), (bias_row.shape, bias_row.dtype),
              ((rows_blk, out_cols), out_dtype),
              ((rows_blk + 2, in_cols), jnp.float32)]       # halo scratch
    kern = functools.partial(_bn_gelu_conv_kernel, h_img=h_img)
    return pl.pallas_call(
        kern,
        out_shape=jax.ShapeDtypeStruct((total_rows, out_cols), out_dtype),
        grid=(steps,),
        in_specs=[
            pl.BlockSpec((rows_blk, in_cols), lambda i: (i, 0)),
            pl.BlockSpec(ss.shape, lambda i: (0, 0)),
            pl.BlockSpec(a_ops.shape, lambda i: (0, 0, 0)),
            pl.BlockSpec(bias_row.shape, lambda i: (0, 0)),
        ],
        out_specs=pl.BlockSpec((rows_blk, out_cols), lambda i: (i, 0)),
        scratch_shapes=[pltpu.VMEM((rows_blk + 2, in_cols), jnp.float32)],
        compiler_params=pltpu.CompilerParams(
            dimension_semantics=("parallel",),
            vmem_limit_bytes=_vmem_limit_bytes(blocks)),
    )(y1, ss, a_ops, bias_row)


# ----------------------------------------------------------------------------
# Full Up.forward
# ----------------------------------------------------------------------------
def up_forward(x_nchw, params):
    n, cin, h, w = x_nchw.shape
    h2, w2 = 2 * h, 2 * w
    cmid = params["w1"].shape[0]
    cout = params["w2"].shape[0]
    dtype = x_nchw.dtype

    block_n = _pick_block_n(n, h2)       # images stacked per grid step

    # channels-last, (image*row) x (width*channel) lane-dense flattened view
    x2d = jnp.transpose(x_nchw, (0, 2, 3, 1)).reshape(n * h, w * cin)

    # ---- BatchNorm1 batch statistics (Pallas partials, reduced outside) ----
    cs1 = column_sums(x2d, rows_per_step=block_n * h)
    ss1 = _bn_scale_shift(cs1, n * h, cin,
                          params["bn1_gamma"], params["bn1_beta"])

    # ---- static operators (align_corners=True, scale 2; conv taps folded) --
    uh = _upsample_matrix(h, h2)
    uw = _upsample_matrix(w, w2)
    l_ops = jnp.asarray(_row_ops(uh, block_n), dtype=jnp.bfloat16)
    r_ops = _up_conv_right_ops(params["w1"], uw).astype(jnp.bfloat16)
    a_ops = _conv_right_ops(params["w2"], w2).astype(jnp.bfloat16)
    b1t = jnp.tile(params["b1"].astype(jnp.float32), w2)[None, :]
    b2t = jnp.tile(params["b2"].astype(jnp.float32), w2)[None, :]

    # ---- kernel B: BN1 + GELU + upsample2x + conv1 + bias (+ BN2 partials) -
    y1, cs2 = fused_bn_gelu_up_conv(
        x2d, ss1, l_ops, r_ops, b1t,
        rows_in=block_n * h, rows_out=block_n * h2, mid_dtype=jnp.bfloat16)
    ss2 = _bn_scale_shift(cs2, n * h2, cmid,
                          params["bn2_gamma"], params["bn2_beta"])

    # ---- kernel C: BN2 + GELU + conv2 + bias ----
    y2 = fused_bn_gelu_conv(y1, ss2, a_ops, b2t,
                            rows_blk=block_n * h2, h_img=h2, out_dtype=dtype)

    # NHWC-flat -> NCHW (thin XLA layout glue on the final output)
    return jnp.transpose(y2.reshape(n, h2, w2, cout), (0, 3, 1, 2))


# ----------------------------------------------------------------------------
# Pure-JAX reference (independent math) for the self-check.
# ----------------------------------------------------------------------------
def _ref_bn_gelu(x, gamma, beta):
    mean = jnp.mean(x, axis=(0, 1, 2), keepdims=True)
    var = jnp.mean((x - mean) ** 2, axis=(0, 1, 2), keepdims=True)
    y = (x - mean) * jax.lax.rsqrt(var + _EPS) * gamma + beta
    return _gelu(y)


def _ref_upsample(x_nhwc):
    n, h, w, c = x_nhwc.shape

    def axis_interp(size_in, size_out):
        coord = jnp.arange(size_out, dtype=jnp.float32) * (size_in - 1) / (size_out - 1)
        i0 = jnp.floor(coord).astype(jnp.int32)
        i1 = jnp.minimum(i0 + 1, size_in - 1)
        frac = coord - i0.astype(jnp.float32)
        return i0, i1, frac

    i0, i1, fh = axis_interp(h, 2 * h)
    xh = (x_nhwc[:, i0, :, :] * (1.0 - fh)[None, :, None, None]
          + x_nhwc[:, i1, :, :] * fh[None, :, None, None])
    j0, j1, fw = axis_interp(w, 2 * w)
    return (xh[:, :, j0, :] * (1.0 - fw)[None, None, :, None]
            + xh[:, :, j1, :] * fw[None, None, :, None])


def _ref_conv(x, w_oihw, b):
    w_hwio = jnp.transpose(w_oihw, (2, 3, 1, 0))
    y = jax.lax.conv_general_dilated(
        x, w_hwio, window_strides=(1, 1), padding="SAME",
        dimension_numbers=("NHWC", "HWIO", "NHWC"),
        precision=jax.lax.Precision.HIGHEST)
    return y + b[None, None, None, :]


def up_forward_ref(x_nchw, params):
    x = jnp.transpose(x_nchw, (0, 2, 3, 1))
    x = _ref_bn_gelu(x, params["bn1_gamma"], params["bn1_beta"])
    x = _ref_upsample(x)
    x = _ref_conv(x, params["w1"], params["b1"])
    x = _ref_bn_gelu(x, params["bn2_gamma"], params["bn2_beta"])
    x = _ref_conv(x, params["w2"], params["b2"])
    return jnp.transpose(x, (0, 3, 1, 2))


if __name__ == "__main__":
    in_channels, mid_channels, out_channels = 4, 8, 4
    N, H, W = 2, 16, 16

    key = jax.random.PRNGKey(0)
    k_x, k_w1, k_b1, k_w2, k_b2 = jax.random.split(key, 5)

    x = jax.random.normal(k_x, (N, in_channels, H, W), dtype=jnp.float32)

    params = {
        # BatchNorm2d defaults: gamma = 1, beta = 0
        "bn1_gamma": jnp.ones((in_channels,), jnp.float32),
        "bn1_beta": jnp.zeros((in_channels,), jnp.float32),
        "bn2_gamma": jnp.ones((mid_channels,), jnp.float32),
        "bn2_beta": jnp.zeros((mid_channels,), jnp.float32),
        # Conv2d weights (Cout, Cin, 3, 3) + bias (Cout,)
        "w1": 0.1 * jax.random.normal(k_w1, (mid_channels, in_channels, 3, 3), jnp.float32),
        "b1": 0.05 * jax.random.normal(k_b1, (mid_channels,), jnp.float32),
        "w2": 0.1 * jax.random.normal(k_w2, (out_channels, mid_channels, 3, 3), jnp.float32),
        "b2": 0.05 * jax.random.normal(k_b2, (out_channels,), jnp.float32),
    }

    out = jax.block_until_ready(jax.jit(up_forward)(x, params))
    ref = jax.block_until_ready(jax.jit(up_forward_ref)(x, params))

    assert out.shape == (N, out_channels, 2 * H, 2 * W), out.shape
    assert bool(jnp.all(jnp.isfinite(out)))
    max_err = float(jnp.max(jnp.abs(out - ref)))
    assert max_err < 2e-2, f"mismatch vs reference: {max_err}"

    print("KERNEL_OK")
</pallas_src>

<mosaic_0001>
module attributes {stable_mosaic.version = 11 : i64} {
  func.func @_colsum_kernel(%arg0: i32, %arg1: memref<32x64xf32, #tpu.memory_space<vmem>>, %arg2: memref<1x2x64xf32, #tpu.memory_space<vmem>>) attributes {dimension_semantics = [#tpu.dimension_semantics<parallel>], iteration_bounds = array<i64: 1>, scalar_prefetch = 0 : i64, scratch_operands = 0 : i64, tpu.core_type = #tpu.core_type<tc>, window_params = [{transform_indices = @transform_0, window_bounds = array<i64: 32, 64>}, {transform_indices = @transform_1, window_bounds = array<i64: 1, 2, 64>}]} {
    %c0 = arith.constant 0 : index
    %c0_0 = arith.constant 0 : index
    %0 = vector.load %arg1[%c0, %c0_0] : memref<32x64xf32, #tpu.memory_space<vmem>>, vector<32x64xf32>
    %cst = arith.constant dense<0.000000e+00> : vector<64xf32>
    %1 = vector.multi_reduction <add>, %0, %cst [0] : vector<32x64xf32> to vector<64xf32>
    %2 = vector.shape_cast %1 : vector<64xf32> to vector<1x64xf32>
    %3 = arith.mulf %0, %0 : vector<32x64xf32>
    %cst_1 = arith.constant dense<0.000000e+00> : vector<64xf32>
    %4 = vector.multi_reduction <add>, %3, %cst_1 [0] : vector<32x64xf32> to vector<64xf32>
    %5 = vector.shape_cast %4 : vector<64xf32> to vector<1x64xf32>
    %6 = tpu.concatenate %2, %5 in 0 : vector<1x64xf32>, vector<1x64xf32> -> vector<2x64xf32>
    %c0_2 = arith.constant 0 : index
    %c0_3 = arith.constant 0 : index
    %c0_4 = arith.constant 0 : index
    %7 = vector.load %arg2[%c0_2, %c0_3, %c0_4] : memref<1x2x64xf32, #tpu.memory_space<vmem>>, vector<1x2x64xf32>
    %8 = vector.shape_cast %7 : vector<1x2x64xf32> to vector<2x64xf32>
    %9 = vector.shape_cast %6 : vector<2x64xf32> to vector<1x2x64xf32>
    tpu.vector_store %arg2[%c0_2, %c0_3, %c0_4], %9 {strides = array<i32>} : memref<1x2x64xf32, #tpu.memory_space<vmem>>, vector<1x2x64xf32>,
    return
  }
  func.func @transform_0(%arg0: i32) -> (i32, i32) {
    %c0_i32 = arith.constant 0 : i32
    %c0_i32_0 = arith.constant 0 : i32
    return %arg0, %c0_i32 : i32, i32
  }
  func.func @transform_1(%arg0: i32) -> (i32, i32, i32) {
    %c0_i32 = arith.constant 0 : i32
    %c0_i32_0 = arith.constant 0 : i32
    %c0_i32_1 = arith.constant 0 : i32
    return %arg0, %c0_i32, %c0_i32_0 : i32, i32, i32
  }
}

module attributes {stable_mosaic.version = 11 : i64} {
  func.func @_bn_gelu_up_conv_kernel(%arg0: i32, %arg1: memref<32x64xf32, #tpu.memory_space<vmem>>, %arg2: memref<2x64xf32, #tpu.memory_space<vmem>>, %arg3: memref<3x64x32xbf16, #tpu.memory_space<vmem>>, %arg4: memref<3x64x256xbf16, #tpu.memory_space<vmem>>, %arg5: memref<1x256xf32, #tpu.memory_space<vmem>>, %arg6: memref<64x256xbf16, #tpu.memory_space<vmem>>, %arg7: memref<1x2x256xf32, #tpu.memory_space<vmem>>) attributes {dimension_semantics = [#tpu.dimension_semantics<parallel>], iteration_bounds = array<i64: 1>, scalar_prefetch = 0 : i64, scratch_operands = 0 : i64, tpu.core_type = #tpu.core_type<tc>, window_params = [{transform_indices = @transform_0, window_bounds = array<i64: 32, 64>}, {pipeline_mode = #tpu.pipeline_mode<synchronous>, transform_indices = @transform_1, window_bounds = array<i64: 2, 64>}, {pipeline_mode = #tpu.pipeline_mode<synchronous>, transform_indices = @transform_2, window_bounds = array<i64: 3, 64, 32>}, {pipeline_mode = #tpu.pipeline_mode<synchronous>, transform_indices = @transform_3, window_bounds = array<i64: 3, 64, 256>}, {pipeline_mode = #tpu.pipeline_mode<synchronous>, transform_indices = @transform_4, window_bounds = array<i64: 1, 256>}, {transform_indices = @transform_5, window_bounds = array<i64: 64, 256>}, {transform_indices = @transform_6, window_bounds = array<i64: 1, 2, 256>}]} {
    %c0 = arith.constant 0 : index
    %c0_0 = arith.constant 0 : index
    %0 = vector.load %arg1[%c0, %c0_0] : memref<32x64xf32, #tpu.memory_space<vmem>>, vector<32x64xf32>
    %c0_1 = arith.constant 0 : index
    %c0_2 = arith.constant 0 : index
    %1 = vector.load %arg2[%c0_1, %c0_2] : memref<2x64xf32, #tpu.memory_space<vmem>>, vector<2x64xf32>
    %2 = vector.extract_strided_slice %1 {offsets = [0, 0], sizes = [1, 64], strides = [1, 1]} : vector<2x64xf32> to vector<1x64xf32>
    %3 = vector.broadcast %2 : vector<1x64xf32> to vector<32x64xf32>
    %4 = arith.mulf %0, %3 : vector<32x64xf32>
    %5 = vector.extract_strided_slice %1 {offsets = [1, 0], sizes = [1, 64], strides = [1, 1]} : vector<2x64xf32> to vector<1x64xf32>
    %6 = vector.broadcast %5 : vector<1x64xf32> to vector<32x64xf32>
    %7 = arith.addf %4, %6 : vector<32x64xf32>
    %cst = arith.constant 5.000000e-01 : f32
    %8 = vector.broadcast %cst : f32 to vector<32x64xf32>
    %9 = arith.mulf %8, %7 : vector<32x64xf32>
    %cst_3 = arith.constant 0.707106769 : f32
    %10 = vector.broadcast %cst_3 : f32 to vector<32x64xf32>
    %11 = arith.mulf %7, %10 : vector<32x64xf32>
    %12 = math.erf %11 : vector<32x64xf32>
    %cst_4 = arith.constant 1.000000e+00 : f32
    %13 = vector.broadcast %cst_4 : f32 to vector<32x64xf32>
    %14 = arith.addf %13, %12 : vector<32x64xf32>
    %15 = arith.mulf %9, %14 : vector<32x64xf32>
    %16 = arith.truncf %15 : vector<32x64xf32> to vector<32x64xbf16>
    %cst_5 = arith.constant 0.000000e+00 : f32
    %17 = vector.broadcast %cst_5 : f32 to vector<64x256xf32>
    %c0_6 = arith.constant 0 : index
    %c0_7 = arith.constant 0 : index
    %c0_8 = arith.constant 0 : index
    %18 = vector.load %arg3[%c0_6, %c0_7, %c0_8] : memref<3x64x32xbf16, #tpu.memory_space<vmem>>, vector<1x64x32xbf16>
    %19 = vector.shape_cast %18 : vector<1x64x32xbf16> to vector<64x32xbf16>
    %cst_9 = arith.constant dense<0.000000e+00> : vector<64x64xf32>
    %20 = tpu.matmul %19, %16, %cst_9 {dimension_numbers = #tpu.dot_dimension_numbers<[1], [0], [0], [1], [0, 0, 1, 1], [], []>} : vector<64x32xbf16>, vector<32x64xbf16>, vector<64x64xf32> -> vector<64x64xf32>
    %21 = arith.truncf %20 : vector<64x64xf32> to vector<64x64xbf16>
    %c0_10 = arith.constant 0 : index
    %c0_11 = arith.constant 0 : index
    %c0_12 = arith.constant 0 : index
    %22 = vector.load %arg4[%c0_10, %c0_11, %c0_12] : memref<3x64x256xbf16, #tpu.memory_space<vmem>>, vector<1x64x256xbf16>
    %23 = vector.shape_cast %22 : vector<1x64x256xbf16> to vector<64x256xbf16>
    %cst_13 = arith.constant dense<0.000000e+00> : vector<64x256xf32>
    %24 = tpu.matmul %21, %23, %cst_13 {dimension_numbers = #tpu.dot_dimension_numbers<[1], [0], [0], [1], [0, 0, 1, 1], [], []>} : vector<64x64xbf16>, vector<64x256xbf16>, vector<64x256xf32> -> vector<64x256xf32>
    %25 = arith.addf %17, %24 : vector<64x256xf32>
    %c1 = arith.constant 1 : index
    %c0_14 = arith.constant 0 : index
    %c0_15 = arith.constant 0 : index
    %26 = vector.load %arg3[%c1, %c0_14, %c0_15] : memref<3x64x32xbf16, #tpu.memory_space<vmem>>, vector<1x64x32xbf16>
    %27 = vector.shape_cast %26 : vector<1x64x32xbf16> to vector<64x32xbf16>
    %cst_16 = arith.constant dense<0.000000e+00> : vector<64x64xf32>
    %28 = tpu.matmul %27, %16, %cst_16 {dimension_numbers = #tpu.dot_dimension_numbers<[1], [0], [0], [1], [0, 0, 1, 1], [], []>} : vector<64x32xbf16>, vector<32x64xbf16>, vector<64x64xf32> -> vector<64x64xf32>
    %29 = arith.truncf %28 : vector<64x64xf32> to vector<64x64xbf16>
    %c1_17 = arith.constant 1 : index
    %c0_18 = arith.constant 0 : index
    %c0_19 = arith.constant 0 : index
    %30 = vector.load %arg4[%c1_17, %c0_18, %c0_19] : memref<3x64x256xbf16, #tpu.memory_space<vmem>>, vector<1x64x256xbf16>
    %31 = vector.shape_cast %30 : vector<1x64x256xbf16> to vector<64x256xbf16>
    %cst_20 = arith.constant dense<0.000000e+00> : vector<64x256xf32>
    %32 = tpu.matmul %29, %31, %cst_20 {dimension_numbers = #tpu.dot_dimension_numbers<[1], [0], [0], [1], [0, 0, 1, 1], [], []>} : vector<64x64xbf16>, vector<64x256xbf16>, vector<64x256xf32> -> vector<64x256xf32>
    %33 = arith.addf %25, %32 : vector<64x256xf32>
    %c2 = arith.constant 2 : index
    %c0_21 = arith.constant 0 : index
    %c0_22 = arith.constant 0 : index
    %34 = vector.load %arg3[%c2, %c0_21, %c0_22] : memref<3x64x32xbf16, #tpu.memory_space<vmem>>, vector<1x64x32xbf16>
    %35 = vector.shape_cast %34 : vector<1x64x32xbf16> to vector<64x32xbf16>
    %cst_23 = arith.constant dense<0.000000e+00> : vector<64x64xf32>
    %36 = tpu.matmul %35, %16, %cst_23 {dimension_numbers = #tpu.dot_dimension_numbers<[1], [0], [0], [1], [0, 0, 1, 1], [], []>} : vector<64x32xbf16>, vector<32x64xbf16>, vector<64x64xf32> -> vector<64x64xf32>
    %37 = arith.truncf %36 : vector<64x64xf32> to vector<64x64xbf16>
    %c2_24 = arith.constant 2 : index
    %c0_25 = arith.constant 0 : index
    %c0_26 = arith.constant 0 : index
    %38 = vector.load %arg4[%c2_24, %c0_25, %c0_26] : memref<3x64x256xbf16, #tpu.memory_space<vmem>>, vector<1x64x256xbf16>
    %39 = vector.shape_cast %38 : vector<1x64x256xbf16> to vector<64x256xbf16>
    %cst_27 = arith.constant dense<0.000000e+00> : vector<64x256xf32>
    %40 = tpu.matmul %37, %39, %cst_27 {dimension_numbers = #tpu.dot_dimension_numbers<[1], [0], [0], [1], [0, 0, 1, 1], [], []>} : vector<64x64xbf16>, vector<64x256xbf16>, vector<64x256xf32> -> vector<64x256xf32>
    %41 = arith.addf %33, %40 : vector<64x256xf32>
    %c0_28 = arith.constant 0 : index
    %c0_29 = arith.constant 0 : index
    %42 = vector.load %arg5[%c0_28, %c0_29] : memref<1x256xf32, #tpu.memory_space<vmem>>, vector<1x256xf32>
    %43 = vector.broadcast %42 : vector<1x256xf32> to vector<64x256xf32>
    %44 = arith.addf %41, %43 : vector<64x256xf32>
    %45 = arith.truncf %44 : vector<64x256xf32> to vector<64x256xbf16>
    %c0_30 = arith.constant 0 : index
    %c0_31 = arith.constant 0 : index
    %46 = vector.load %arg6[%c0_30, %c0_31] : memref<64x256xbf16, #tpu.memory_space<vmem>>, vector<64x256xbf16>
    tpu.vector_store %arg6[%c0_30, %c0_31], %45 {strides = array<i32>} : memref<64x256xbf16, #tpu.memory_space<vmem>>, vector<64x256xbf16>,
    %47 = arith.extf %45 : vector<64x256xbf16> to vector<64x256xf32>
    %cst_32 = arith.constant dense<0.000000e+00> : vector<256xf32>
    %48 = vector.multi_reduction <add>, %47, %cst_32 [0] : vector<64x256xf32> to vector<256xf32>
    %49 = vector.shape_cast %48 : vector<256xf32> to vector<1x256xf32>
    %50 = arith.mulf %47, %47 : vector<64x256xf32>
    %cst_33 = arith.constant dense<0.000000e+00> : vector<256xf32>
    %51 = vector.multi_reduction <add>, %50, %cst_33 [0] : vector<64x256xf32> to vector<256xf32>
    %52 = vector.shape_cast %51 : vector<256xf32> to vector<1x256xf32>
    %53 = tpu.concatenate %49, %52 in 0 : vector<1x256xf32>, vector<1x256xf32> -> vector<2x256xf32>
    %c0_34 = arith.constant 0 : index
    %c0_35 = arith.constant 0 : index
    %c0_36 = arith.constant 0 : index
    %54 = vector.load %arg7[%c0_34, %c0_35, %c0_36] : memref<1x2x256xf32, #tpu.memory_space<vmem>>, vector<1x2x256xf32>
    %55 = vector.shape_cast %54 : vector<1x2x256xf32> to vector<2x256xf32>
    %56 = vector.shape_cast %53 : vector<2x256xf32> to vector<1x2x256xf32>
    tpu.vector_store %arg7[%c0_34, %c0_35, %c0_36], %56 {strides = array<i32>} : memref<1x2x256xf32, #tpu.memory_space<vmem>>, vector<1x2x256xf32>,
    return
  }
  func.func @transform_0(%arg0: i32) -> (i32, i32) {
    %c0_i32 = arith.constant 0 : i32
    %c0_i32_0 = arith.constant 0 : i32
    return %arg0, %c0_i32 : i32, i32
  }
  func.func @transform_1(%arg0: i32) -> (i32, i32) {
    %c0_i32 = arith.constant 0 : i32
    %c0_i32_0 = arith.constant 0 : i32
    %c0_i32_1 = arith.constant 0 : i32
    return %c0_i32, %c0_i32_0 : i32, i32
  }
  func.func @transform_2(%arg0: i32) -> (i32, i32, i32) {
    %c0_i32 = arith.constant 0 : i32
    %c0_i32_0 = arith.constant 0 : i32
    %c0_i32_1 = arith.constant 0 : i32
    %c0_i32_2 = arith.constant 0 : i32
    return %c0_i32, %c0_i32_0, %c0_i32_1 : i32, i32, i32
  }
  func.func @transform_3(%arg0: i32) -> (i32, i32, i32) {
    %c0_i32 = arith.constant 0 : i32
    %c0_i32_0 = arith.constant 0 : i32
    %c0_i32_1 = arith.constant 0 : i32
    %c0_i32_2 = arith.constant 0 : i32
    return %c0_i32, %c0_i32_0, %c0_i32_1 : i32, i32, i32
  }
  func.func @transform_4(%arg0: i32) -> (i32, i32) {
    %c0_i32 = arith.constant 0 : i32
    %c0_i32_0 = arith.constant 0 : i32
    %c0_i32_1 = arith.constant 0 : i32
    return %c0_i32, %c0_i32_0 : i32, i32
  }
  func.func @transform_5(%arg0: i32) -> (i32, i32) {
    %c0_i32 = arith.constant 0 : i32
    %c0_i32_0 = arith.constant 0 : i32
    return %arg0, %c0_i32 : i32, i32
  }
  func.func @transform_6(%arg0: i32) -> (i32, i32, i32) {
    %c0_i32 = arith.constant 0 : i32
    %c0_i32_0 = arith.constant 0 : i32
    %c0_i32_1 = arith.constant 0 : i32
    return %arg0, %c0_i32, %c0_i32_0 : i32, i32, i32
  }
}

module attributes {stable_mosaic.version = 11 : i64} {
  func.func @_bn_gelu_conv_kernel(%arg0: i32, %arg1: memref<64x256xbf16, #tpu.memory_space<vmem>>, %arg2: memref<2x256xf32, #tpu.memory_space<vmem>>, %arg3: memref<3x256x128xbf16, #tpu.memory_space<vmem>>, %arg4: memref<1x128xf32, #tpu.memory_space<vmem>>, %arg5: memref<64x128xf32, #tpu.memory_space<vmem>>, %arg6: memref<66x256xf32, #tpu.memory_space<vmem>>) attributes {dimension_semantics = [#tpu.dimension_semantics<parallel>], iteration_bounds = array<i64: 1>, scalar_prefetch = 0 : i64, scratch_operands = 1 : i64, tpu.core_type = #tpu.core_type<tc>, window_params = [{transform_indices = @transform_0, window_bounds = array<i64: 64, 256>}, {pipeline_mode = #tpu.pipeline_mode<synchronous>, transform_indices = @transform_1, window_bounds = array<i64: 2, 256>}, {pipeline_mode = #tpu.pipeline_mode<synchronous>, transform_indices = @transform_2, window_bounds = array<i64: 3, 256, 128>}, {pipeline_mode = #tpu.pipeline_mode<synchronous>, transform_indices = @transform_3, window_bounds = array<i64: 1, 128>}, {transform_indices = @transform_4, window_bounds = array<i64: 64, 128>}]} {
    %c0 = arith.constant 0 : index
    %c0_0 = arith.constant 0 : index
    %0 = vector.load %arg1[%c0, %c0_0] : memref<64x256xbf16, #tpu.memory_space<vmem>>, vector<64x256xbf16>
    %1 = arith.extf %0 : vector<64x256xbf16> to vector<64x256xf32>
    %c0_1 = arith.constant 0 : index
    %c0_2 = arith.constant 0 : index
    %2 = vector.load %arg2[%c0_1, %c0_2] : memref<2x256xf32, #tpu.memory_space<vmem>>, vector<2x256xf32>
    %3 = vector.extract_strided_slice %2 {offsets = [0, 0], sizes = [1, 256], strides = [1, 1]} : vector<2x256xf32> to vector<1x256xf32>
    %4 = vector.broadcast %3 : vector<1x256xf32> to vector<64x256xf32>
    %5 = arith.mulf %1, %4 : vector<64x256xf32>
    %6 = vector.extract_strided_slice %2 {offsets = [1, 0], sizes = [1, 256], strides = [1, 1]} : vector<2x256xf32> to vector<1x256xf32>
    %7 = vector.broadcast %6 : vector<1x256xf32> to vector<64x256xf32>
    %8 = arith.addf %5, %7 : vector<64x256xf32>
    %cst = arith.constant 5.000000e-01 : f32
    %9 = vector.broadcast %cst : f32 to vector<64x256xf32>
    %10 = arith.mulf %9, %8 : vector<64x256xf32>
    %cst_3 = arith.constant 0.707106769 : f32
    %11 = vector.broadcast %cst_3 : f32 to vector<64x256xf32>
    %12 = arith.mulf %8, %11 : vector<64x256xf32>
    %13 = math.erf %12 : vector<64x256xf32>
    %cst_4 = arith.constant 1.000000e+00 : f32
    %14 = vector.broadcast %cst_4 : f32 to vector<64x256xf32>
    %15 = arith.addf %14, %13 : vector<64x256xf32>
    %16 = arith.mulf %10, %15 : vector<64x256xf32>
    %17 = arith.truncf %16 : vector<64x256xf32> to vector<64x256xbf16>
    %c1 = arith.constant 1 : index
    %c0_5 = arith.constant 0 : index
    %18 = vector.load %arg6[%c1, %c0_5] : memref<66x256xf32, #tpu.memory_space<vmem>>, vector<64x256xf32>
    tpu.vector_store %arg6[%c1, %c0_5], %16 {strides = array<i32>} : memref<66x256xf32, #tpu.memory_space<vmem>>, vector<64x256xf32>,
    %19 = tpu.iota {dimensions = array<i32: 0>} : vector<64x1xi32>
    %c1_6 = arith.constant 1 : index
    %c0_7 = arith.constant 0 : index
    %c0_8 = arith.constant 0 : index
    %20 = vector.load %arg3[%c1_6, %c0_7, %c0_8] : memref<3x256x128xbf16, #tpu.memory_space<vmem>>, vector<1x256x128xbf16>
    %21 = vector.shape_cast %20 : vector<1x256x128xbf16> to vector<256x128xbf16>
    %cst_9 = arith.constant dense<0.000000e+00> : vector<64x128xf32>
    %22 = tpu.matmul %17, %21, %cst_9 {dimension_numbers = #tpu.dot_dimension_numbers<[1], [0], [0], [1], [0, 0, 1, 1], [], []>} : vector<64x256xbf16>, vector<256x128xbf16>, vector<64x128xf32> -> vector<64x128xf32>
    %c32_i32 = arith.constant 32 : i32
    %c0_i32 = arith.constant 0 : i32
    %23 = arith.cmpi eq, %c32_i32, %c0_i32 : i32
    %c1_i32 = arith.constant 1 : i32
    %24 = arith.select %23, %c1_i32, %c32_i32 : i32
    %25 = vector.broadcast %24 : i32 to vector<64x1xi32>
    %26 = arith.remsi %19, %25 : vector<64x1xi32>
    %c0_i32_10 = arith.constant 0 : i32
    %27 = vector.broadcast %c0_i32_10 : i32 to vector<64x1xi32>
    %28 = arith.cmpi ne, %26, %27 : vector<64x1xi32>
    %c0_i32_11 = arith.constant 0 : i32
    %29 = vector.broadcast %c0_i32_11 : i32 to vector<64x1xi32>
    %30 = arith.cmpi slt, %26, %29 : vector<64x1xi32>
    %c0_i32_12 = arith.constant 0 : i32
    %31 = arith.cmpi slt, %24, %c0_i32_12 : i32
    %32 = vector.broadcast %31 : i1 to vector<64x1xi1>
    %33 = vector.broadcast %32 : vector<64x1xi1> to vector<64x1xi1>
    %34 = arith.xori %30, %33 : vector<64x1xi1>
    %35 = arith.andi %34, %28 : vector<64x1xi1>
    %36 = vector.broadcast %24 : i32 to vector<64x1xi32>
    %37 = arith.addi %26, %36 : vector<64x1xi32>
    %38 = arith.select %35, %37, %26 : vector<64x1xi1>, vector<64x1xi32>
    %c0_i32_13 = arith.constant 0 : i32
    %39 = vector.broadcast %c0_i32_13 : i32 to vector<64x1xi32>
    %40 = arith.cmpi eq, %38, %39 : vector<64x1xi32>
    %c0_14 = arith.constant 0 : index
    %c0_15 = arith.constant 0 : index
    %41 = vector.load %arg6[%c0_14, %c0_15] : memref<66x256xf32, #tpu.memory_space<vmem>>, vector<64x256xf32>
    %cst_16 = arith.constant 0.000000e+00 : f32
    %42 = vector.shape_cast %40 : vector<64x1xi1> to vector<64x1xi1>
    %43 = vector.broadcast %42 : vector<64x1xi1> to vector<64x256xi1>
    %44 = vector.broadcast %cst_16 : f32 to vector<64x256xf32>
    %45 = arith.select %43, %44, %41 : vector<64x256xi1>, vector<64x256xf32>
    %46 = arith.truncf %45 : vector<64x256xf32> to vector<64x256xbf16>
    %c0_17 = arith.constant 0 : index
    %c0_18 = arith.constant 0 : index
    %c0_19 = arith.constant 0 : index
    %47 = vector.load %arg3[%c0_17, %c0_18, %c0_19] : memref<3x256x128xbf16, #tpu.memory_space<vmem>>, vector<1x256x128xbf16>
    %48 = vector.shape_cast %47 : vector<1x256x128xbf16> to vector<256x128xbf16>
    %cst_20 = arith.constant dense<0.000000e+00> : vector<64x128xf32>
    %49 = tpu.matmul %46, %48, %cst_20 {dimension_numbers = #tpu.dot_dimension_numbers<[1], [0], [0], [1], [0, 0, 1, 1], [], []>} : vector<64x256xbf16>, vector<256x128xbf16>, vector<64x128xf32> -> vector<64x128xf32>
    %50 = arith.addf %22, %49 : vector<64x128xf32>
    %c32_i32_21 = arith.constant 32 : i32
    %c0_i32_22 = arith.constant 0 : i32
    %51 = arith.cmpi eq, %c32_i32_21, %c0_i32_22 : i32
    %c1_i32_23 = arith.constant 1 : i32
    %52 = arith.select %51, %c1_i32_23, %c32_i32_21 : i32
    %53 = vector.broadcast %52 : i32 to vector<64x1xi32>
    %54 = arith.remsi %19, %53 : vector<64x1xi32>
    %c0_i32_24 = arith.constant 0 : i32
    %55 = vector.broadcast %c0_i32_24 : i32 to vector<64x1xi32>
    %56 = arith.cmpi ne, %54, %55 : vector<64x1xi32>
    %c0_i32_25 = arith.constant 0 : i32
    %57 = vector.broadcast %c0_i32_25 : i32 to vector<64x1xi32>
    %58 = arith.cmpi slt, %54, %57 : vector<64x1xi32>
    %c0_i32_26 = arith.constant 0 : i32
    %59 = arith.cmpi slt, %52, %c0_i32_26 : i32
    %60 = vector.broadcast %59 : i1 to vector<64x1xi1>
    %61 = vector.broadcast %60 : vector<64x1xi1> to vector<64x1xi1>
    %62 = arith.xori %58, %61 : vector<64x1xi1>
    %63 = arith.andi %62, %56 : vector<64x1xi1>
    %64 = vector.broadcast %52 : i32 to vector<64x1xi32>
    %65 = arith.addi %54, %64 : vector<64x1xi32>
    %66 = arith.select %63, %65, %54 : vector<64x1xi1>, vector<64x1xi32>
    %c31_i32 = arith.constant 31 : i32
    %67 = vector.broadcast %c31_i32 : i32 to vector<64x1xi32>
    %68 = arith.cmpi eq, %66, %67 : vector<64x1xi32>
    %c2 = arith.constant 2 : index
    %c0_27 = arith.constant 0 : index
    %69 = vector.load %arg6[%c2, %c0_27] : memref<66x256xf32, #tpu.memory_space<vmem>>, vector<64x256xf32>
    %cst_28 = arith.constant 0.000000e+00 : f32
    %70 = vector.shape_cast %68 : vector<64x1xi1> to vector<64x1xi1>
    %71 = vector.broadcast %70 : vector<64x1xi1> to vector<64x256xi1>
    %72 = vector.broadcast %cst_28 : f32 to vector<64x256xf32>
    %73 = arith.select %71, %72, %69 : vector<64x256xi1>, vector<64x256xf32>
    %74 = arith.truncf %73 : vector<64x256xf32> to vector<64x256xbf16>
    %c2_29 = arith.constant 2 : index
    %c0_30 = arith.constant 0 : index
    %c0_31 = arith.constant 0 : index
    %75 = vector.load %arg3[%c2_29, %c0_30, %c0_31] : memref<3x256x128xbf16, #tpu.memory_space<vmem>>, vector<1x256x128xbf16>
    %76 = vector.shape_cast %75 : vector<1x256x128xbf16> to vector<256x128xbf16>
    %cst_32 = arith.constant dense<0.000000e+00> : vector<64x128xf32>
    %77 = tpu.matmul %74, %76, %cst_32 {dimension_numbers = #tpu.dot_dimension_numbers<[1], [0], [0], [1], [0, 0, 1, 1], [], []>} : vector<64x256xbf16>, vector<256x128xbf16>, vector<64x128xf32> -> vector<64x128xf32>
    %78 = arith.addf %50, %77 : vector<64x128xf32>
    %c0_33 = arith.constant 0 : index
    %c0_34 = arith.constant 0 : index
    %79 = vector.load %arg4[%c0_33, %c0_34] : memref<1x128xf32, #tpu.memory_space<vmem>>, vector<1x128xf32>
    %80 = vector.broadcast %79 : vector<1x128xf32> to vector<64x128xf32>
    %81 = arith.addf %78, %80 : vector<64x128xf32>
    %c0_35 = arith.constant 0 : index
    %c0_36 = arith.constant 0 : index
    %82 = vector.load %arg5[%c0_35, %c0_36] : memref<64x128xf32, #tpu.memory_space<vmem>>, vector<64x128xf32>
    tpu.vector_store %arg5[%c0_35, %c0_36], %81 {strides = array<i32>} : memref<64x128xf32, #tpu.memory_space<vmem>>, vector<64x128xf32>,
    return
  }
  func.func @transform_0(%arg0: i32) -> (i32, i32) {
    %c0_i32 = arith.constant 0 : i32
    %c0_i32_0 = arith.constant 0 : i32
    return %arg0, %c0_i32 : i32, i32
  }
  func.func @transform_1(%arg0: i32) -> (i32, i32) {
    %c0_i32 = arith.constant 0 : i32
    %c0_i32_0 = arith.constant 0 : i32
    %c0_i32_1 = arith.constant 0 : i32
    return %c0_i32, %c0_i32_0 : i32, i32
  }
  func.func @transform_2(%arg0: i32) -> (i32, i32, i32) {
    %c0_i32 = arith.constant 0 : i32
    %c0_i32_0 = arith.constant 0 : i32
    %c0_i32_1 = arith.constant 0 : i32
    %c0_i32_2 = arith.constant 0 : i32
    return %c0_i32, %c0_i32_0, %c0_i32_1 : i32, i32, i32
  }
  func.func @transform_3(%arg0: i32) -> (i32, i32) {
    %c0_i32 = arith.constant 0 : i32
    %c0_i32_0 = arith.constant 0 : i32
    %c0_i32_1 = arith.constant 0 : i32
    return %c0_i32, %c0_i32_0 : i32, i32
  }
  func.func @transform_4(%arg0: i32) -> (i32, i32) {
    %c0_i32 = arith.constant 0 : i32
    %c0_i32_0 = arith.constant 0 : i32
    return %arg0, %c0_i32 : i32, i32
  }
}

</mosaic_0001>

<llo_original>
// kernel: tile.33
$region0: #{tile.33}
  #allocation0 [shape = 's32[1]{0}', space=sflag, size = 0x4, scoped, tag = 'scoped memory for tile.33']
  %s0 = inlined_call_operand.vmem [shape: f32[4], index: 0, kind: input, shape index: {}]
  %s1 = inlined_call_operand.vmem [shape: f32[16,4], index: 1, kind: output, shape index: {}]
  // Predicated region
  $region2: #{tile.33} parent=0 // pred_check
    _
  $region3: #{tile.33} parent=0 // pred_check_branch
    %3 = sbr.rel (0) target = $region5
  $region4: #{tile.33} parent=0 // pred_region
    _
  $region5: #{tile.33} parent=0 // pred_fallthru
    _
  %v4 = vld [vmem:[%s0] ss:$0 sm:$0xff]
  %5 = vst [vmem:[%s1] sm:$0xff] %v4
  %s6 = scalar_lea.vmem %s1, 8
  %7 = vst [vmem:[%s6] sm:$0xff] %v4

// kernel: tile.38
$region0: #{tile.38}
  %s0 = inlined_call_operand.vmem [shape: f32[16,4], index: 0, kind: input, shape index: {}]
  %s1 = inlined_call_operand.vmem [shape: f32[1,64], index: 1, kind: output, shape index: {}]
  $region1: #{tile.38} parent=0
    #allocation0 [shape = 'u8[4096]{0}', space=vmem, size = 0x1000, scoped, tag = 'scoped mem for output reshape']
    %v2 = vld [vmem:[%s0] sm:$0x1]
    %vm3 = vcmask 31744
    %4 = vst.msk [vmem:[#allocation0] sm:$0x1] %vm3, %v2
    %s5 = scalar_lea.vmem %s0, 15
    %v6 = vld [vmem:[%s5] sm:$0x1]
    %7 = vrot.lane.b32.xlu0 %v6, 60
    %v8 = vpop.permute.xlu0 %7
    %vm9 = vcmask 523744
    %10 = vst.msk [vmem:[#allocation0] sm:$0x1] %vm9, %v8
    %s11 = scalar_lea.vmem %s0, 14
    %v12 = vld [vmem:[%s11] sm:$0x1]
    %13 = vrot.lane.b32.xlu0 %v12, 56
    %v14 = vpop.permute.xlu0 %13
    %vm15 = vcmask 490944
    %16 = vst.msk [vmem:[#allocation0] sm:$0x1] %vm15, %v14
    %s17 = scalar_lea.vmem %s0, 13
    %v18 = vld [vmem:[%s17] sm:$0x1]
    %19 = vrot.lane.b32.xlu0 %v18, 52
    %v20 = vpop.permute.xlu0 %19
    %vm21 = vcmask 458144
    %22 = vst.msk [vmem:[#allocation0] sm:$0x1] %vm21, %v20
    %s23 = scalar_lea.vmem %s0, 12
    %v24 = vld [vmem:[%s23] sm:$0x1]
    %25 = vrot.lane.b32.xlu0 %v24, 48
    %v26 = vpop.permute.xlu0 %25
    %vm27 = vcmask 425344
    %28 = vst.msk [vmem:[#allocation0] sm:$0x1] %vm27, %v26
    %s29 = scalar_lea.vmem %s0, 11
    %v30 = vld [vmem:[%s29] sm:$0x1]
    %31 = vrot.lane.b32.xlu0 %v30, 44
    %v32 = vpop.permute.xlu0 %31
    %vm33 = vcmask 392544
    %34 = vst.msk [vmem:[#allocation0] sm:$0x1] %vm33, %v32
    %s35 = scalar_lea.vmem %s0, 10
    %v36 = vld [vmem:[%s35] sm:$0x1]
    %37 = vrot.lane.b32.xlu0 %v36, 40
    %v38 = vpop.permute.xlu0 %37
    %vm39 = vcmask 359744
    %40 = vst.msk [vmem:[#allocation0] sm:$0x1] %vm39, %v38
    %s41 = scalar_lea.vmem %s0, 9
    %v42 = vld [vmem:[%s41] sm:$0x1]
    %43 = vrot.lane.b32.xlu0 %v42, 36
    %v44 = vpop.permute.xlu0 %43
    %vm45 = vcmask 326944
    %46 = vst.msk [vmem:[#allocation0] sm:$0x1] %vm45, %v44
    %s47 = scalar_lea.vmem %s0, 8
    %v48 = vld [vmem:[%s47] sm:$0x1]
    %49 = vrot.lane.b32.xlu0 %v48, 32
    %v50 = vpop.permute.xlu0 %49
    %vm51 = vcmask 294144
    %52 = vst.msk [vmem:[#allocation0] sm:$0x1] %vm51, %v50
    %s53 = scalar_lea.vmem %s0, 7
    %v54 = vld [vmem:[%s53] sm:$0x1]
    %55 = vrot.lane.b32.xlu0 %v54, 28
    %v56 = vpop.permute.xlu0 %55
    %vm57 = vcmask 261344
    %58 = vst.msk [vmem:[#allocation0] sm:$0x1] %vm57, %v56
    %s59 = scalar_lea.vmem %s0, 6
    %v60 = vld [vmem:[%s59] sm:$0x1]
    %61 = vrot.lane.b32.xlu0 %v60, 24
    %v62 = vpop.permute.xlu0 %61
    %vm63 = vcmask 228544
    %64 = vst.msk [vmem:[#allocation0] sm:$0x1] %vm63, %v62
    %s65 = scalar_lea.vmem %s0, 5
    %v66 = vld [vmem:[%s65] sm:$0x1]
    %67 = vrot.lane.b32.xlu0 %v66, 20
    %v68 = vpop.permute.xlu0 %67
    %vm69 = vcmask 195744
    %70 = vst.msk [vmem:[#allocation0] sm:$0x1] %vm69, %v68
    %s71 = scalar_lea.vmem %s0, 4
    %v72 = vld [vmem:[%s71] sm:$0x1]
    %73 = vrot.lane.b32.xlu0 %v72, 16
    %v74 = vpop.permute.xlu0 %73
    %vm75 = vcmask 162944
    %76 = vst.msk [vmem:[#allocation0] sm:$0x1] %vm75, %v74
    %s77 = scalar_lea.vmem %s0, 3
    %v78 = vld [vmem:[%s77] sm:$0x1]
    %79 = vrot.lane.b32.xlu0 %v78, 12
    %v80 = vpop.permute.xlu0 %79
    %vm81 = vcmask 130144
    %82 = vst.msk [vmem:[#allocation0] sm:$0x1] %vm81, %v80
    %s83 = scalar_lea.vmem %s0, 2
    %v84 = vld [vmem:[%s83] sm:$0x1]
    %85 = vrot.lane.b32.xlu0 %v84, 8
    %v86 = vpop.permute.xlu0 %85
    %vm87 = vcmask 97344
    %88 = vst.msk [vmem:[#allocation0] sm:$0x1] %vm87, %v86
    %s89 = scalar_lea.vmem %s0, 1
    %v90 = vld [vmem:[%s89] sm:$0x1]
    %91 = vrot.lane.b32.xlu0 %v90, 4
    %v92 = vpop.permute.xlu0 %91
    %vm93 = vcmask 64544
    %94 = vst.msk [vmem:[#allocation0] sm:$0x1] %vm93, %v92
    %s96 = sshllo.u32 0, 1
    %v98 = vld [vmem:[#allocation0] sm:%s96]
    %s99 = sshllo.u32 0, 1
    %100 = vst [vmem:[%s1] sm:%s99] %v98

// kernel: up_forward.3
$region0: #{up_forward.3}
  #allocation0 [shape = 'u32[]', space=smem, size = 0x4, offset = 0x4, fixed_abs, tag = 'smem constant byte address 0x4 - core index']
  #allocation1 [shape = 'u32[144,128]{1,0:T(1,128)}', space=vmem, size = 0x12000, scoped, tag = 'internal scratch']
  %s0 = inlined_call_operand.vmem [shape: f32[32,64], index: 0, kind: input, shape index: {}]
  %s1 = inlined_call_operand.vmem [shape: f32[1,2,64], index: 1, kind: output, shape index: {}]
  %s2 = sld [smem:[#allocation0]]
  $region14: #{up_forward.3} parent=0
    _
  %s4 = ssub.s32 1, %s2
  %s5 = scalar_select 0, %s4, %s2
  // Predicated region
  $region2: #{up_forward.3} parent=0 // pred_check
    _
  $region3: #{up_forward.3} parent=0 // pred_check_branch
    %7 = sbr.rel (0) target = $region5
  $region4: #{up_forward.3} parent=0 // pred_region
    _
  $region5: #{up_forward.3} parent=0 // pred_fallthru
    _
  %v8 = vld [vmem:[%s0] sm:$0xff]
  %v9 = vld [vmem:[%s0 + $0x8] sm:$0xff]
  %v10 = vld [vmem:[%s0 + $0x10] sm:$0xff]
  %v11 = vld [vmem:[%s0 + $0x18] sm:$0xff]
  %vm12 = vcmask 523264
  %v13 = vsel %vm12, %v8, 0.0
  %v14 = vsel %vm12, %v9, 0.0
  %v15 = vadd.f32 %v13, %v14
  %v16 = vsel %vm12, %v10, 0.0
  %v17 = vadd.f32 %v15, %v16
  %v18 = vsel %vm12, %v11, 0.0
  %v19 = vadd.f32 %v17, %v18
  %v20 = vrot.slane %v19, 4
  %v21 = vadd.f32 %v19, %v20
  %v22 = vrot.slane %v21, 2
  %v23 = vadd.f32 %v21, %v22
  %v24 = vrot.slane %v23, 1
  %v25 = vadd.f32 %v23, %v24
  %v26 = vmul.f32 %v8, %v8
  %v27 = vmul.f32 %v9, %v9
  %v28 = vmul.f32 %v10, %v10
  %v29 = vmul.f32 %v11, %v11
  %v30 = vsel %vm12, %v26, 0.0
  %v31 = vsel %vm12, %v27, 0.0
  %v32 = vadd.f32 %v30, %v31
  %v33 = vsel %vm12, %v28, 0.0
  %v34 = vadd.f32 %v32, %v33
  %v35 = vsel %vm12, %v29, 0.0
  %v36 = vadd.f32 %v34, %v35
  %v37 = vrot.slane %v36, 4
  %v38 = vadd.f32 %v36, %v37
  %v39 = vrot.slane %v38, 2
  %v40 = vadd.f32 %v38, %v39
  %v41 = vrot.slane %v40, 1
  %v42 = vadd.f32 %v40, %v41
  %vm43 = vcmask 1040384
  %v44 = vsel %vm43, %v25, %v42
  %vm45 = vcmask 517120
  %46 = vst.msk [vmem:[%s1] sm:$0x3] %vm45, %v44
  // Predicated region
  $region6: #{up_forward.3} parent=0 // pred_check
    _
  $region7: #{up_forward.3} parent=0 // pred_check_branch
    %48 = sbr.rel (0) target = $region9
  $region8: #{up_forward.3} parent=0 // pred_region
    _
  $region9: #{up_forward.3} parent=0 // pred_fallthru
    _
  // Predicated region
  $region10: #{up_forward.3} parent=0 // pred_check
    _
  $region11: #{up_forward.3} parent=0 // pred_check_branch
    %50 = sbr.rel (0) target = $region13
  $region12: #{up_forward.3} parent=0 // pred_region
    _
  $region13: #{up_forward.3} parent=0 // pred_fallthru
    _

// kernel: tile.43
$region0: #{tile.43}
  #allocation0 [shape = 's32[1]{0}', space=sflag, size = 0x4, scoped, tag = 'scoped memory for tile.43']
  %s0 = inlined_call_operand.vmem [shape: f32[8], index: 0, kind: input, shape index: {}]
  %s1 = inlined_call_operand.vmem [shape: f32[32,8], index: 1, kind: output, shape index: {}]
  // Predicated region
  $region2: #{tile.43} parent=0 // pred_check
    _
  $region3: #{tile.43} parent=0 // pred_check_branch
    %3 = sbr.rel (0) target = $region5
  $region4: #{tile.43} parent=0 // pred_region
    _
  $region5: #{tile.43} parent=0 // pred_fallthru
    _
  %v4 = vld [vmem:[%s0] ss:$0 sm:$0xff]
  %5 = vst [vmem:[%s1] sm:$0xff] %v4
  %s6 = scalar_lea.vmem %s1, 8
  %7 = vst [vmem:[%s6] sm:$0xff] %v4
  %s8 = scalar_lea.vmem %s1, 16
  %9 = vst [vmem:[%s8] sm:$0xff] %v4
  %s10 = scalar_lea.vmem %s1, 24
  %11 = vst [vmem:[%s10] sm:$0xff] %v4

// kernel: tile.44
$region0: #{tile.44}
  %s0 = inlined_call_operand.vmem [shape: f32[32,8], index: 0, kind: input, shape index: {}]
  %s1 = inlined_call_operand.vmem [shape: f32[1,256], index: 1, kind: output, shape index: {}]
  $region1: #{tile.44} parent=0
    #allocation0 [shape = 'u8[8192]{0}', space=vmem, size = 0x2000, scoped, tag = 'scoped mem for output reshape']
    %s2 = smov 3
    %v3 = vld [vmem:[%s0] ss:$16 sm:%s2]
    %vm4 = vcmask 64512
    %5 = vst.msk [vmem:[#allocation0] ss:$8 sm:$0x3] %vm4, %v3
    %s6 = scalar_lea.vmem %s0, 15
    %s7 = smov 3
    %v8 = vld [vmem:[%s6] ss:$16 sm:%s7]
    %9 = vrot.lane.b32.xlu0 %v8, 120
    %v10 = vpop.permute.xlu0 %9
    %vm11 = vcmask 1048512
    %12 = vst.msk [vmem:[#allocation0] ss:$8 sm:$0x3] %vm11, %v10
    %s13 = scalar_lea.vmem %s0, 14
    %s14 = smov 3
    %v15 = vld [vmem:[%s13] ss:$16 sm:%s14]
    %16 = vrot.lane.b32.xlu0 %v15, 112
    %v17 = vpop.permute.xlu0 %16
    %vm18 = vcmask 982912
    %19 = vst.msk [vmem:[#allocation0] ss:$8 sm:$0x3] %vm18, %v17
    %s20 = scalar_lea.vmem %s0, 13
    %s21 = smov 3
    %v22 = vld [vmem:[%s20] ss:$16 sm:%s21]
    %23 = vrot.lane.b32.xlu0 %v22, 104
    %v24 = vpop.permute.xlu0 %23
    %vm25 = vcmask 917312
    %26 = vst.msk [vmem:[#allocation0] ss:$8 sm:$0x3] %vm25, %v24
    %s27 = scalar_lea.vmem %s0, 12
    %s28 = smov 3
    %v29 = vld [vmem:[%s27] ss:$16 sm:%s28]
    %30 = vrot.lane.b32.xlu0 %v29, 96
    %v31 = vpop.permute.xlu0 %30
    %vm32 = vcmask 851712
    %33 = vst.msk [vmem:[#allocation0] ss:$8 sm:$0x3] %vm32, %v31
    %s34 = scalar_lea.vmem %s0, 11
    %s35 = smov 3
    %v36 = vld [vmem:[%s34] ss:$16 sm:%s35]
    %37 = vrot.lane.b32.xlu0 %v36, 88
    %v38 = vpop.permute.xlu0 %37
    %vm39 = vcmask 786112
    %40 = vst.msk [vmem:[#allocation0] ss:$8 sm:$0x3] %vm39, %v38
    %s41 = scalar_lea.vmem %s0, 10
    %s42 = smov 3
    %v43 = vld [vmem:[%s41] ss:$16 sm:%s42]
    %44 = vrot.lane.b32.xlu0 %v43, 80
    %v45 = vpop.permute.xlu0 %44
    %vm46 = vcmask 720512
    %47 = vst.msk [vmem:[#allocation0] ss:$8 sm:$0x3] %vm46, %v45
    %s48 = scalar_lea.vmem %s0, 9
    %s49 = smov 3
    %v50 = vld [vmem:[%s48] ss:$16 sm:%s49]
    %51 = vrot.lane.b32.xlu0 %v50, 72
    %v52 = vpop.permute.xlu0 %51
    %vm53 = vcmask 654912
    %54 = vst.msk [vmem:[#allocation0] ss:$8 sm:$0x3] %vm53, %v52
    %s55 = scalar_lea.vmem %s0, 8
    %s56 = smov 3
    %v57 = vld [vmem:[%s55] ss:$16 sm:%s56]
    %58 = vrot.lane.b32.xlu0 %v57, 64
    %v59 = vpop.permute.xlu0 %58
    %vm60 = vcmask 589312
    %61 = vst.msk [vmem:[#allocation0] ss:$8 sm:$0x3] %vm60, %v59
    %s62 = scalar_lea.vmem %s0, 7
    %s63 = smov 3
    %v64 = vld [vmem:[%s62] ss:$16 sm:%s63]
    %65 = vrot.lane.b32.xlu0 %v64, 56
    %v66 = vpop.permute.xlu0 %65
    %vm67 = vcmask 523712
    %68 = vst.msk [vmem:[#allocation0] ss:$8 sm:$0x3] %vm67, %v66
    %s69 = scalar_lea.vmem %s0, 6
    %s70 = smov 3
    %v71 = vld [vmem:[%s69] ss:$16 sm:%s70]
    %72 = vrot.lane.b32.xlu0 %v71, 48
    %v73 = vpop.permute.xlu0 %72
    %vm74 = vcmask 458112
    %75 = vst.msk [vmem:[#allocation0] ss:$8 sm:$0x3] %vm74, %v73
    %s76 = scalar_lea.vmem %s0, 5
    %s77 = smov 3
    %v78 = vld [vmem:[%s76] ss:$16 sm:%s77]
    %79 = vrot.lane.b32.xlu0 %v78, 40
    %v80 = vpop.permute.xlu0 %79
    %vm81 = vcmask 392512
    %82 = vst.msk [vmem:[#allocation0] ss:$8 sm:$0x3] %vm81, %v80
    %s83 = scalar_lea.vmem %s0, 4
    %s84 = smov 3
    %v85 = vld [vmem:[%s83] ss:$16 sm:%s84]
    %86 = vrot.lane.b32.xlu0 %v85, 32
    %v87 = vpop.permute.xlu0 %86
    %vm88 = vcmask 326912
    %89 = vst.msk [vmem:[#allocation0] ss:$8 sm:$0x3] %vm88, %v87
    %s90 = scalar_lea.vmem %s0, 3
    %s91 = smov 3
    %v92 = vld [vmem:[%s90] ss:$16 sm:%s91]
    %93 = vrot.lane.b32.xlu0 %v92, 24
    %v94 = vpop.permute.xlu0 %93
    %vm95 = vcmask 261312
    %96 = vst.msk [vmem:[#allocation0] ss:$8 sm:$0x3] %vm95, %v94
    %s97 = scalar_lea.vmem %s0, 2
    %s98 = smov 3
    %v99 = vld [vmem:[%s97] ss:$16 sm:%s98]
    %100 = vrot.lane.b32.xlu0 %v99, 16
    %v101 = vpop.permute.xlu0 %100
    %vm102 = vcmask 195712
    %103 = vst.msk [vmem:[#allocation0] ss:$8 sm:$0x3] %vm102, %v101
    %s104 = scalar_lea.vmem %s0, 1
    %s105 = smov 3
    %v106 = vld [vmem:[%s104] ss:$16 sm:%s105]
    %107 = vrot.lane.b32.xlu0 %v106, 8
    %v108 = vpop.permute.xlu0 %107
    %vm109 = vcmask 130112
    %110 = vst.msk [vmem:[#allocation0] ss:$8 sm:$0x3] %vm109, %v108
    %s112 = sshllo.u32 0, 1
    %v114 = vld [vmem:[#allocation0] sm:%s112]
    %s115 = sshllo.u32 0, 1
    %116 = vst [vmem:[%s1] sm:%s115] %v114
    %s117 = scalar_lea.vmem [#allocation0], 8
    %v118 = vld [vmem:[%s117] sm:%s112]
    %s119 = sshllo.u32 0, 1
    %s120 = scalar_lea.vmem %s1, 1
    %121 = vst [vmem:[%s120] sm:%s119] %v118

// kernel: up_forward.4
$region0: #{up_forward.4}
  #allocation0 [shape = 'u32[]', space=smem, size = 0x4, offset = 0x4, fixed_abs, tag = 'smem constant byte address 0x4 - core index']
  #allocation1 [shape = 'u32[144,128]{1,0:T(1,128)}', space=vmem, size = 0x12000, scoped, tag = 'internal scratch']
  %s0 = inlined_call_operand.vmem [shape: f32[32,64], index: 0, kind: input, shape index: {}]
  %s1 = inlined_call_operand.vmem [shape: f32[2,64], index: 1, kind: input, shape index: {}]
  %s2 = inlined_call_operand.vmem [shape: bf16[3,64,32], index: 2, kind: input, shape index: {}]
  %s3 = inlined_call_operand.vmem [shape: bf16[3,64,256], index: 3, kind: input, shape index: {}]
  %s4 = inlined_call_operand.vmem [shape: f32[1,256], index: 4, kind: input, shape index: {}]
  %s5 = inlined_call_operand.vmem [shape: bf16[64,256], index: 5, kind: output, shape index: {0}]
  %s6 = inlined_call_operand.vmem [shape: f32[1,2,256], index: 6, kind: output, shape index: {1}]
  %7 = xla_tuple %s5, %s6
  %s8 = sld [smem:[#allocation0]]
  $region38: #{up_forward.4} parent=0
    _
  %s10 = ssub.s32 1, %s8
  %s11 = scalar_select 0, %s10, %s8
  // Predicated region
  $region2: #{up_forward.4} parent=0 // pred_check
    _
  $region3: #{up_forward.4} parent=0 // pred_check_branch
    %13 = sbr.rel (0) target = $region5
  $region4: #{up_forward.4} parent=0 // pred_region
    _
  $region5: #{up_forward.4} parent=0 // pred_fallthru
    _
  // Predicated region
  $region6: #{up_forward.4} parent=0 // pred_check
    _
  $region7: #{up_forward.4} parent=0 // pred_check_branch
    %15 = sbr.rel (0) target = $region9
  $region8: #{up_forward.4} parent=0 // pred_region
    _
  $region9: #{up_forward.4} parent=0 // pred_fallthru
    _
  // Predicated region
  $region10: #{up_forward.4} parent=0 // pred_check
    _
  $region11: #{up_forward.4} parent=0 // pred_check_branch
    %17 = sbr.rel (0) target = $region13
  $region12: #{up_forward.4} parent=0 // pred_region
    _
  $region13: #{up_forward.4} parent=0 // pred_fallthru
    _
  // Predicated region
  $region14: #{up_forward.4} parent=0 // pred_check
    _
  $region15: #{up_forward.4} parent=0 // pred_check_branch
    %19 = sbr.rel (0) target = $region17
  $region16: #{up_forward.4} parent=0 // pred_region
    _
  $region17: #{up_forward.4} parent=0 // pred_fallthru
    _
  // Predicated region
  $region18: #{up_forward.4} parent=0 // pred_check
    _
  $region19: #{up_forward.4} parent=0 // pred_check_branch
    %21 = sbr.rel (0) target = $region21
  $region20: #{up_forward.4} parent=0 // pred_region
    _
  $region21: #{up_forward.4} parent=0 // pred_fallthru
    _
  %v23 = vld [vmem:[%s0] sm:$0xff]
  %v24 = vld [vmem:[%s0 + $0x8] sm:$0xff]
  %v25 = vld [vmem:[%s0 + $0x10] sm:$0xff]
  %v26 = vld [vmem:[%s0 + $0x18] sm:$0xff]
  %v27 = vld [vmem:[%s1] sm:$0x3]
  %v28 = vlaneseq
  %v29 = vshrl.u32 %v28, 7
  %v30 = vsub.s32 0, %v29
  %v31 = vrot.slane %v27, %v30
  %v32 = vmul.f32 %v23, %v31
  %v33 = vmul.f32 %v24, %v31
  %v34 = vmul.f32 %v25, %v31
  %v35 = vmul.f32 %v26, %v31
  %v36 = vlaneseq
  %v37 = vshrl.u32 %v36, 7
  %v38 = vsub.s32 1, %v37
  %v39 = vrot.slane %v27, %v38
  %v40 = vadd.f32 %v32, %v39
  %v41 = vadd.f32 %v33, %v39
  %v42 = vadd.f32 %v34, %v39
  %v43 = vadd.f32 %v35, %v39
  %v44 = vmul.f32 %v40, 0.5
  %v45 = vmul.f32 %v41, 0.5
  %v46 = vmul.f32 %v42, 0.5
  %v47 = vmul.f32 %v43, 0.5
  %v48 = vmul.f32 %v40, 0.70710677
  %v49 = vmul.f32 %v41, 0.70710677
  %v50 = vmul.f32 %v42, 0.70710677
  %v51 = vmul.f32 %v43, 0.70710677
  %v52 = verf.f32.pop %v48
  %v53 = verf.f32.pop %v49
  %v54 = verf.f32.pop %v50
  %v55 = verf.f32.pop %v51
  %v56 = vadd.f32 %v52, 1.0
  %v57 = vadd.f32 %v53, 1.0
  %v58 = vadd.f32 %v54, 1.0
  %v59 = vadd.f32 %v55, 1.0
  %v60 = vmul.f32 %v44, %v56
  %v61 = vmul.f32 %v45, %v57
  %v62 = vmul.f32 %v46, %v58
  %v63 = vmul.f32 %v47, %v59
  %v64 = vpack.c.bf16 %v61, %v60
  %v65 = vpack.c.bf16 %v63, %v62
  %v66 = vld [vmem:[%s2] sm:$0xf]
  %v67 = vld [vmem:[%s2 + $0x4] sm:$0xf]
  %v68 = vld [vmem:[%s2 + $0x8] sm:$0xf]
  %v69 = vld [vmem:[%s2 + $0xc] sm:$0xf]
  %v70 = vld [vmem:[%s2 + $0x10] sm:$0xf]
  %v71 = vld [vmem:[%s2 + $0x14] sm:$0xf]
  %v72 = vld [vmem:[%s2 + $0x18] sm:$0xf]
  %v73 = vld [vmem:[%s2 + $0x1c] sm:$0xf]
  %v82 = vunpack.c.l.b16 %v66
  %v83 = vunpack.c.l.b16 %v67
  %v84 = vunpack.c.l.b16 %v68
  %v85 = vunpack.c.l.b16 %v69
  %v86 = vunpack.c.l.b16 %v70
  %v87 = vunpack.c.l.b16 %v71
  %v88 = vunpack.c.l.b16 %v72
  %v89 = vunpack.c.l.b16 %v73
  %v90 = vpack.c.b16 %v83, %v82
  %v91 = vpack.c.b16 %v85, %v84
  %v92 = vpack.c.b16 %v87, %v86
  %v93 = vpack.c.b16 %v89, %v88
  %vm94 = vcmask 261120
  %v96 = vsel %vm94, %v90, 0
  %v99 = vsel %vm94, %v91, 0
  %v102 = vsel %vm94, %v92, 0
  %v105 = vsel %vm94, %v93, 0
  %107 = vmatprep.subr.bf16.mxu0 0
  %108 = vmatpush1.bf16.msra.mxu0 %v64
  %109 = vmatprep.subr.bf16.mxu0 0
  %110 = vmatpush1.bf16.msra.mxu0 %v65
  %111 = vmatprep.subr.bf16.mxu0 0
  %112 = vmatpush1.bf16.msra.mxu0 0
  %113 = vmatprep.subr.bf16.mxu0 0
  %114 = vmatpush1.bf16.msra.mxu0 0
  %115 = vmatprep.subr.bf16.mxu0 0
  %116 = vmatpush1.bf16.msra.mxu0 0
  %117 = vmatprep.subr.bf16.mxu0 0
  %118 = vmatpush1.bf16.msra.mxu0 0
  %119 = vmatprep.subr.bf16.mxu0 0
  %120 = vmatpush1.bf16.msra.mxu0 0
  %121 = vmatprep.subr.bf16.mxu0 0
  %122 = vmatpush1.bf16.msra.mxu0 0
  %123 = vmatprep.subr.bf16.mxu0 0
  %124 = vmatpush1.bf16.msra.mxu0 0
  %125 = vmatprep.subr.bf16.mxu0 0
  %126 = vmatpush1.bf16.msra.mxu0 0
  %127 = vmatprep.subr.bf16.mxu0 0
  %128 = vmatpush1.bf16.msra.mxu0 0
  %129 = vmatprep.subr.bf16.mxu0 0
  %130 = vmatpush1.bf16.msra.mxu0 0
  %131 = vmatprep.subr.bf16.mxu0 0
  %132 = vmatpush1.bf16.msra.mxu0 0
  %133 = vmatprep.subr.bf16.mxu0 0
  %134 = vmatpush1.bf16.msra.mxu0 0
  %135 = vmatprep.subr.bf16.mxu0 0
  %136 = vmatpush1.bf16.msra.mxu0 0
  %137 = vmatprep.subr.bf16.mxu0 0
  %138 = vmatpush1.bf16.msra.mxu0 0
  %139 = vmatprep.mubr.bf16.mxu0 0
  %140 = vmatmul.mubr.bf16.gmra.mrb[0].mxu0 %v96
  %v141 = vpop.f32.mrb[0].mxu0
  %v142 = vadd.f32 0.0, %v141
  %v143 = vpop.f32.mrb[0].mxu0
  %v144 = vpop.f32.mrb[0].mxu0
  %v145 = vadd.f32 0.0, %v144
  %v146 = vpop.f32.mrb[0].mxu0
  %147 = vmatprep.mubr.bf16.mxu0 0
  %148 = vmatmul.mubr.bf16.gmra.mrb[0].mxu0 %v99
  %v149 = vpop.f32.mrb[0].mxu0
  %v150 = vadd.f32 0.0, %v149
  %v151 = vpop.f32.mrb[0].mxu0
  %v152 = vpop.f32.mrb[0].mxu0
  %v153 = vadd.f32 0.0, %v152
  %v154 = vpop.f32.mrb[0].mxu0
  %155 = vmatprep.mubr.bf16.mxu0 0
  %156 = vmatmul.mubr.bf16.gmra.mrb[0].mxu0 %v102
  %v157 = vpop.f32.mrb[0].mxu0
  %v158 = vadd.f32 0.0, %v157
  %v159 = vpop.f32.mrb[0].mxu0
  %v160 = vpop.f32.mrb[0].mxu0
  %v161 = vadd.f32 0.0, %v160
  %v162 = vpop.f32.mrb[0].mxu0
  %163 = vmatprep.mubr.bf16.mxu0 0
  %164 = vmatmul.mubr.bf16.gmra.mrb[0].mxu0 %v105
  %v165 = vpop.f32.mrb[0].mxu0
  %v166 = vadd.f32 0.0, %v165
  %v167 = vpop.f32.mrb[0].mxu0
  %v168 = vpop.f32.mrb[0].mxu0
  %v169 = vadd.f32 0.0, %v168
  %v170 = vpop.f32.mrb[0].mxu0
  %171 = vdwg.mxu0
  %v172 = vpack.c.bf16 %v145, %v142
  %v173 = vpack.c.bf16 %v153, %v150
  %v174 = vpack.c.bf16 %v161, %v158
  %v175 = vpack.c.bf16 %v169, %v166
  %v176 = vld [vmem:[%s3] sm:$0xff]
  %v177 = vld [vmem:[%s3 + $0x8] sm:$0xff]
  %v178 = vld [vmem:[%s3 + $0x10] sm:$0xff]
  %v179 = vld [vmem:[%s3 + $0x18] sm:$0xff]
  %v180 = vld [vmem:[%s3 + $0x20] sm:$0xff]
  %v181 = vld [vmem:[%s3 + $0x28] sm:$0xff]
  %v182 = vld [vmem:[%s3 + $0x30] sm:$0xff]
  %v183 = vld [vmem:[%s3 + $0x38] sm:$0xff]
  %s184 = scalar_lea.vmem %s2, 32
  %v185 = vld [vmem:[%s184] sm:$0xf]
  %v186 = vld [vmem:[%s184 + $0x4] sm:$0xf]
  %v187 = vld [vmem:[%s184 + $0x8] sm:$0xf]
  %v188 = vld [vmem:[%s184 + $0xc] sm:$0xf]
  %v189 = vld [vmem:[%s184 + $0x10] sm:$0xf]
  %v190 = vld [vmem:[%s184 + $0x14] sm:$0xf]
  %v191 = vld [vmem:[%s184 + $0x18] sm:$0xf]
  %v192 = vld [vmem:[%s184 + $0x1c] sm:$0xf]
  %v201 = vunpack.c.l.b16 %v185
  %v202 = vunpack.c.l.b16 %v186
  %v203 = vunpack.c.l.b16 %v187
  %v204 = vunpack.c.l.b16 %v188
  %v205 = vunpack.c.l.b16 %v189
  %v206 = vunpack.c.l.b16 %v190
  %v207 = vunpack.c.l.b16 %v191
  %v208 = vunpack.c.l.b16 %v192
  %v209 = vpack.c.b16 %v202, %v201
  %v210 = vpack.c.b16 %v204, %v203
  %v211 = vpack.c.b16 %v206, %v205
  %v212 = vpack.c.b16 %v208, %v207
  %v214 = vsel %vm94, %v209, 0
  %v217 = vsel %vm94, %v210, 0
  %v220 = vsel %vm94, %v211, 0
  %v223 = vsel %vm94, %v212, 0
  %225 = vmatprep.subr.bf16.mxu0 0
  %226 = vmatpush1.bf16.msra.mxu0 %v64
  %227 = vmatprep.subr.bf16.mxu0 0
  %228 = vmatpush1.bf16.msra.mxu0 %v65
  %229 = vmatprep.subr.bf16.mxu0 0
  %230 = vmatpush1.bf16.msra.mxu0 0
  %231 = vmatprep.subr.bf16.mxu0 0
  %232 = vmatpush1.bf16.msra.mxu0 0
  %233 = vmatprep.subr.bf16.mxu0 0
  %234 = vmatpush1.bf16.msra.mxu0 0
  %235 = vmatprep.subr.bf16.mxu0 0
  %236 = vmatpush1.bf16.msra.mxu0 0
  %237 = vmatprep.subr.bf16.mxu0 0
  %238 = vmatpush1.bf16.msra.mxu0 0
  %239 = vmatprep.subr.bf16.mxu0 0
  %240 = vmatpush1.bf16.msra.mxu0 0
  %241 = vmatprep.subr.bf16.mxu0 0
  %242 = vmatpush1.bf16.msra.mxu0 0
  %243 = vmatprep.subr.bf16.mxu0 0
  %244 = vmatpush1.bf16.msra.mxu0 0
  %245 = vmatprep.subr.bf16.mxu0 0
  %246 = vmatpush1.bf16.msra.mxu0 0
  %247 = vmatprep.subr.bf16.mxu0 0
  %248 = vmatpush1.bf16.msra.mxu0 0
  %249 = vmatprep.subr.bf16.mxu0 0
  %250 = vmatpush1.bf16.msra.mxu0 0
  %251 = vmatprep.subr.bf16.mxu0 0
  %252 = vmatpush1.bf16.msra.mxu0 0
  %253 = vmatprep.subr.bf16.mxu0 0
  %254 = vmatpush1.bf16.msra.mxu0 0
  %255 = vmatprep.subr.bf16.mxu0 0
  %256 = vmatpush1.bf16.msra.mxu0 0
  %257 = vmatprep.mubr.bf16.mxu0 0
  %258 = vmatmul.mubr.bf16.gmra.mrb[0].mxu0 %v214
  %v259 = vpop.f32.mrb[0].mxu0
  %v260 = vadd.f32 0.0, %v259
  %v261 = vpop.f32.mrb[0].mxu0
  %v262 = vpop.f32.mrb[0].mxu0
  %v263 = vadd.f32 0.0, %v262
  %v264 = vpop.f32.mrb[0].mxu0
  %265 = vmatprep.mubr.bf16.mxu0 0
  %266 = vmatmul.mubr.bf16.gmra.mrb[0].mxu0 %v217
  %v267 = vpop.f32.mrb[0].mxu0
  %v268 = vadd.f32 0.0, %v267
  %v269 = vpop.f32.mrb[0].mxu0
  %v270 = vpop.f32.mrb[0].mxu0
  %v271 = vadd.f32 0.0, %v270
  %v272 = vpop.f32.mrb[0].mxu0
  %273 = vmatprep.mubr.bf16.mxu0 0
  %274 = vmatmul.mubr.bf16.gmra.mrb[0].mxu0 %v220
  %v275 = vpop.f32.mrb[0].mxu0
  %v276 = vadd.f32 0.0, %v275
  %v277 = vpop.f32.mrb[0].mxu0
  %v278 = vpop.f32.mrb[0].mxu0
  %v279 = vadd.f32 0.0, %v278
  %v280 = vpop.f32.mrb[0].mxu0
  %281 = vmatprep.mubr.bf16.mxu0 0
  %282 = vmatmul.mubr.bf16.gmra.mrb[0].mxu0 %v223
  %v283 = vpop.f32.mrb[0].mxu0
  %v284 = vadd.f32 0.0, %v283
  %v285 = vpop.f32.mrb[0].mxu0
  %v286 = vpop.f32.mrb[0].mxu0
  %v287 = vadd.f32 0.0, %v286
  %v288 = vpop.f32.mrb[0].mxu0
  %289 = vdwg.mxu0
  %v290 = vpack.c.bf16 %v263, %v260
  %v291 = vpack.c.bf16 %v271, %v268
  %v292 = vpack.c.bf16 %v279, %v276
  %v293 = vpack.c.bf16 %v287, %v284
  %s294 = scalar_lea.vmem %s3, 64
  %v295 = vld [vmem:[%s294] sm:$0xff]
  %v296 = vld [vmem:[%s294 + $0x8] sm:$0xff]
  %v297 = vld [vmem:[%s294 + $0x10] sm:$0xff]
  %v298 = vld [vmem:[%s294 + $0x18] sm:$0xff]
  %v299 = vld [vmem:[%s294 + $0x20] sm:$0xff]
  %v300 = vld [vmem:[%s294 + $0x28] sm:$0xff]
  %v301 = vld [vmem:[%s294 + $0x30] sm:$0xff]
  %v302 = vld [vmem:[%s294 + $0x38] sm:$0xff]
  %v311 = vunpack.c.l.b16 %v295
  %v312 = vunpack.c.h.b16 %v295
  %v313 = vunpack.c.l.b16 %v296
  %v314 = vunpack.c.h.b16 %v296
  %v315 = vunpack.c.l.b16 %v297
  %v316 = vunpack.c.h.b16 %v297
  %v317 = vunpack.c.l.b16 %v298
  %v318 = vunpack.c.h.b16 %v298
  %v319 = vunpack.c.l.b16 %v299
  %v320 = vunpack.c.h.b16 %v299
  %v321 = vunpack.c.l.b16 %v300
  %v322 = vunpack.c.h.b16 %v300
  %v323 = vunpack.c.l.b16 %v301
  %v324 = vunpack.c.h.b16 %v301
  %v325 = vunpack.c.l.b16 %v302
  %v326 = vunpack.c.h.b16 %v302
  %v327 = vpack.c.b16 %v313, %v311
  %v328 = vpack.c.b16 %v314, %v312
  %v329 = vpack.c.b16 %v317, %v315
  %v330 = vpack.c.b16 %v318, %v316
  %v331 = vpack.c.b16 %v321, %v319
  %v332 = vpack.c.b16 %v322, %v320
  %v333 = vpack.c.b16 %v325, %v323
  %v334 = vpack.c.b16 %v326, %v324
  %vm343 = vcmask 523264
  %v345 = vsel %vm343, %v290, 0
  %v348 = vsel %vm343, %v291, 0
  %v351 = vsel %vm343, %v292, 0
  %v354 = vsel %vm343, %v293, 0
  %356 = vmatprep.subr.bf16.mxu0 %v328
  %357 = vmatpush1.bf16.msra.mxu0 %v327
  %358 = vmatprep.subr.bf16.mxu0 %v330
  %359 = vmatpush1.bf16.msra.mxu0 %v329
  %360 = vmatprep.subr.bf16.mxu0 %v332
  %361 = vmatpush1.bf16.msra.mxu0 %v331
  %362 = vmatprep.subr.bf16.mxu0 %v334
  %363 = vmatpush1.bf16.msra.mxu0 %v333
  %364 = vmatprep.subr.bf16.mxu0 0
  %365 = vmatpush1.bf16.msra.mxu0 0
  %366 = vmatprep.subr.bf16.mxu0 0
  %367 = vmatpush1.bf16.msra.mxu0 0
  %368 = vmatprep.subr.bf16.mxu0 0
  %369 = vmatpush1.bf16.msra.mxu0 0
  %370 = vmatprep.subr.bf16.mxu0 0
  %371 = vmatpush1.bf16.msra.mxu0 0
  %372 = vmatprep.subr.bf16.mxu0 0
  %373 = vmatpush1.bf16.msra.mxu0 0
  %374 = vmatprep.subr.bf16.mxu0 0
  %375 = vmatpush1.bf16.msra.mxu0 0
  %376 = vmatprep.subr.bf16.mxu0 0
  %377 = vmatpush1.bf16.msra.mxu0 0
  %378 = vmatprep.subr.bf16.mxu0 0
  %379 = vmatpush1.bf16.msra.mxu0 0
  %380 = vmatprep.subr.bf16.mxu0 0
  %381 = vmatpush1.bf16.msra.mxu0 0
  %382 = vmatprep.subr.bf16.mxu0 0
  %383 = vmatpush1.bf16.msra.mxu0 0
  %384 = vmatprep.subr.bf16.mxu0 0
  %385 = vmatpush1.bf16.msra.mxu0 0
  %386 = vmatprep.subr.bf16.mxu0 0
  %387 = vmatpush1.bf16.msra.mxu0 0
  %388 = vmatprep.mubr.bf16.mxu0 0
  %389 = vmatmul.mubr.bf16.gmra.mrb[0].mxu0 %v345
  %v390 = vpop.f32.mrb[0].mxu0
  %v391 = vadd.f32 0.0, %v390
  %v392 = vpop.f32.mrb[0].mxu0
  %v393 = vadd.f32 0.0, %v392
  %v394 = vpop.f32.mrb[0].mxu0
  %v395 = vadd.f32 0.0, %v394
  %v396 = vpop.f32.mrb[0].mxu0
  %v397 = vadd.f32 0.0, %v396
  %398 = vmatprep.mubr.bf16.mxu0 0
  %399 = vmatmul.mubr.bf16.gmra.mrb[0].mxu0 %v348
  %v400 = vpop.f32.mrb[0].mxu0
  %v401 = vadd.f32 0.0, %v400
  %v402 = vpop.f32.mrb[0].mxu0
  %v403 = vadd.f32 0.0, %v402
  %v404 = vpop.f32.mrb[0].mxu0
  %v405 = vadd.f32 0.0, %v404
  %v406 = vpop.f32.mrb[0].mxu0
  %v407 = vadd.f32 0.0, %v406
  %408 = vmatprep.mubr.bf16.mxu0 0
  %409 = vmatmul.mubr.bf16.gmra.mrb[0].mxu0 %v351
  %v410 = vpop.f32.mrb[0].mxu0
  %v411 = vadd.f32 0.0, %v410
  %v412 = vpop.f32.mrb[0].mxu0
  %v413 = vadd.f32 0.0, %v412
  %v414 = vpop.f32.mrb[0].mxu0
  %v415 = vadd.f32 0.0, %v414
  %v416 = vpop.f32.mrb[0].mxu0
  %v417 = vadd.f32 0.0, %v416
  %418 = vmatprep.mubr.bf16.mxu0 0
  %419 = vmatmul.mubr.bf16.gmra.mrb[0].mxu0 %v354
  %v420 = vpop.f32.mrb[0].mxu0
  %v421 = vadd.f32 0.0, %v420
  %v422 = vpop.f32.mrb[0].mxu0
  %v423 = vadd.f32 0.0, %v422
  %v424 = vpop.f32.mrb[0].mxu0
  %v425 = vadd.f32 0.0, %v424
  %v426 = vpop.f32.mrb[0].mxu0
  %v427 = vadd.f32 0.0, %v426
  %428 = vdwg.mxu0
  %v437 = vunpack.c.l.b16 %v176
  %v438 = vunpack.c.h.b16 %v176
  %v439 = vunpack.c.l.b16 %v177
  %v440 = vunpack.c.h.b16 %v177
  %v441 = vunpack.c.l.b16 %v178
  %v442 = vunpack.c.h.b16 %v178
  %v443 = vunpack.c.l.b16 %v179
  %v444 = vunpack.c.h.b16 %v179
  %v445 = vunpack.c.l.b16 %v180
  %v446 = vunpack.c.h.b16 %v180
  %v447 = vunpack.c.l.b16 %v181
  %v448 = vunpack.c.h.b16 %v181
  %v449 = vunpack.c.l.b16 %v182
  %v450 = vunpack.c.h.b16 %v182
  %v451 = vunpack.c.l.b16 %v183
  %v452 = vunpack.c.h.b16 %v183
  %v453 = vpack.c.b16 %v439, %v437
  %v454 = vpack.c.b16 %v440, %v438
  %v455 = vpack.c.b16 %v443, %v441
  %v456 = vpack.c.b16 %v444, %v442
  %v457 = vpack.c.b16 %v447, %v445
  %v458 = vpack.c.b16 %v448, %v446
  %v459 = vpack.c.b16 %v451, %v449
  %v460 = vpack.c.b16 %v452, %v450
  %v470 = vsel %vm343, %v172, 0
  %v473 = vsel %vm343, %v173, 0
  %v476 = vsel %vm343, %v174, 0
  %v479 = vsel %vm343, %v175, 0
  %481 = vmatprep.subr.bf16.mxu0 %v454
  %482 = vmatpush1.bf16.msra.mxu0 %v453
  %483 = vmatprep.subr.bf16.mxu0 %v456
  %484 = vmatpush1.bf16.msra.mxu0 %v455
  %485 = vmatprep.subr.bf16.mxu0 %v458
  %486 = vmatpush1.bf16.msra.mxu0 %v457
  %487 = vmatprep.subr.bf16.mxu0 %v460
  %488 = vmatpush1.bf16.msra.mxu0 %v459
  %489 = vmatprep.subr.bf16.mxu0 0
  %490 = vmatpush1.bf16.msra.mxu0 0
  %491 = vmatprep.subr.bf16.mxu0 0
  %492 = vmatpush1.bf16.msra.mxu0 0
  %493 = vmatprep.subr.bf16.mxu0 0
  %494 = vmatpush1.bf16.msra.mxu0 0
  %495 = vmatprep.subr.bf16.mxu0 0
  %496 = vmatpush1.bf16.msra.mxu0 0
  %497 = vmatprep.subr.bf16.mxu0 0
  %498 = vmatpush1.bf16.msra.mxu0 0
  %499 = vmatprep.subr.bf16.mxu0 0
  %500 = vmatpush1.bf16.msra.mxu0 0
  %501 = vmatprep.subr.bf16.mxu0 0
  %502 = vmatpush1.bf16.msra.mxu0 0
  %503 = vmatprep.subr.bf16.mxu0 0
  %504 = vmatpush1.bf16.msra.mxu0 0
  %505 = vmatprep.subr.bf16.mxu0 0
  %506 = vmatpush1.bf16.msra.mxu0 0
  %507 = vmatprep.subr.bf16.mxu0 0
  %508 = vmatpush1.bf16.msra.mxu0 0
  %509 = vmatprep.subr.bf16.mxu0 0
  %510 = vmatpush1.bf16.msra.mxu0 0
  %511 = vmatprep.subr.bf16.mxu0 0
  %512 = vmatpush1.bf16.msra.mxu0 0
  %513 = vmatprep.mubr.bf16.mxu0 0
  %514 = vmatmul.mubr.bf16.gmra.mrb[0].mxu0 %v470
  %v515 = vpop.f32.mrb[0].mxu0
  %v516 = vadd.f32 %v391, %v515
  %v517 = vpop.f32.mrb[0].mxu0
  %v518 = vadd.f32 %v393, %v517
  %v519 = vpop.f32.mrb[0].mxu0
  %v520 = vadd.f32 %v395, %v519
  %v521 = vpop.f32.mrb[0].mxu0
  %v522 = vadd.f32 %v397, %v521
  %523 = vmatprep.mubr.bf16.mxu0 0
  %524 = vmatmul.mubr.bf16.gmra.mrb[0].mxu0 %v473
  %v525 = vpop.f32.mrb[0].mxu0
  %v526 = vadd.f32 %v401, %v525
  %v527 = vpop.f32.mrb[0].mxu0
  %v528 = vadd.f32 %v403, %v527
  %v529 = vpop.f32.mrb[0].mxu0
  %v530 = vadd.f32 %v405, %v529
  %v531 = vpop.f32.mrb[0].mxu0
  %v532 = vadd.f32 %v407, %v531
  %533 = vmatprep.mubr.bf16.mxu0 0
  %534 = vmatmul.mubr.bf16.gmra.mrb[0].mxu0 %v476
  %v535 = vpop.f32.mrb[0].mxu0
  %v536 = vadd.f32 %v411, %v535
  %v537 = vpop.f32.mrb[0].mxu0
  %v538 = vadd.f32 %v413, %v537
  %v539 = vpop.f32.mrb[0].mxu0
  %v540 = vadd.f32 %v415, %v539
  %v541 = vpop.f32.mrb[0].mxu0
  %v542 = vadd.f32 %v417, %v541
  %543 = vmatprep.mubr.bf16.mxu0 0
  %544 = vmatmul.mubr.bf16.gmra.mrb[0].mxu0 %v479
  %v545 = vpop.f32.mrb[0].mxu0
  %v546 = vadd.f32 %v421, %v545
  %v547 = vpop.f32.mrb[0].mxu0
  %v548 = vadd.f32 %v423, %v547
  %v549 = vpop.f32.mrb[0].mxu0
  %v550 = vadd.f32 %v425, %v549
  %v551 = vpop.f32.mrb[0].mxu0
  %v552 = vadd.f32 %v427, %v551
  %553 = vdwg.mxu0
  %s554 = scalar_lea.vmem %s2, 64
  %v555 = vld [vmem:[%s554] sm:$0xf]
  %v556 = vld [vmem:[%s554 + $0x4] sm:$0xf]
  %v557 = vld [vmem:[%s554 + $0x8] sm:$0xf]
  %v558 = vld [vmem:[%s554 + $0xc] sm:$0xf]
  %v559 = vld [vmem:[%s554 + $0x10] sm:$0xf]
  %v560 = vld [vmem:[%s554 + $0x14] sm:$0xf]
  %v561 = vld [vmem:[%s554 + $0x18] sm:$0xf]
  %v562 = vld [vmem:[%s554 + $0x1c] sm:$0xf]
  %v571 = vunpack.c.l.b16 %v555
  %v572 = vunpack.c.l.b16 %v556
  %v573 = vunpack.c.l.b16 %v557
  %v574 = vunpack.c.l.b16 %v558
  %v575 = vunpack.c.l.b16 %v559
  %v576 = vunpack.c.l.b16 %v560
  %v577 = vunpack.c.l.b16 %v561
  %v578 = vunpack.c.l.b16 %v562
  %v579 = vpack.c.b16 %v572, %v571
  %v580 = vpack.c.b16 %v574, %v573
  %v581 = vpack.c.b16 %v576, %v575
  %v582 = vpack.c.b16 %v578, %v577
  %v584 = vsel %vm94, %v579, 0
  %v587 = vsel %vm94, %v580, 0
  %v590 = vsel %vm94, %v581, 0
  %v593 = vsel %vm94, %v582, 0
  %595 = vmatprep.subr.bf16.mxu0 0
  %596 = vmatpush1.bf16.msra.mxu0 %v64
  %597 = vmatprep.subr.bf16.mxu0 0
  %598 = vmatpush1.bf16.msra.mxu0 %v65
  %599 = vmatprep.subr.bf16.mxu0 0
  %600 = vmatpush1.bf16.msra.mxu0 0
  %601 = vmatprep.subr.bf16.mxu0 0
  %602 = vmatpush1.bf16.msra.mxu0 0
  %603 = vmatprep.subr.bf16.mxu0 0
  %604 = vmatpush1.bf16.msra.mxu0 0
  %605 = vmatprep.subr.bf16.mxu0 0
  %606 = vmatpush1.bf16.msra.mxu0 0
  %607 = vmatprep.subr.bf16.mxu0 0
  %608 = vmatpush1.bf16.msra.mxu0 0
  %609 = vmatprep.subr.bf16.mxu0 0
  %610 = vmatpush1.bf16.msra.mxu0 0
  %611 = vmatprep.subr.bf16.mxu0 0
  %612 = vmatpush1.bf16.msra.mxu0 0
  %613 = vmatprep.subr.bf16.mxu0 0
  %614 = vmatpush1.bf16.msra.mxu0 0
  %615 = vmatprep.subr.bf16.mxu0 0
  %616 = vmatpush1.bf16.msra.mxu0 0
  %617 = vmatprep.subr.bf16.mxu0 0
  %618 = vmatpush1.bf16.msra.mxu0 0
  %619 = vmatprep.subr.bf16.mxu0 0
  %620 = vmatpush1.bf16.msra.mxu0 0
  %621 = vmatprep.subr.bf16.mxu0 0
  %622 = vmatpush1.bf16.msra.mxu0 0
  %623 = vmatprep.subr.bf16.mxu0 0
  %624 = vmatpush1.bf16.msra.mxu0 0
  %625 = vmatprep.subr.bf16.mxu0 0
  %626 = vmatpush1.bf16.msra.mxu0 0
  %627 = vmatprep.mubr.bf16.mxu0 0
  %628 = vmatmul.mubr.bf16.gmra.mrb[0].mxu0 %v584
  %v629 = vpop.f32.mrb[0].mxu0
  %v630 = vadd.f32 0.0, %v629
  %v631 = vpop.f32.mrb[0].mxu0
  %v632 = vpop.f32.mrb[0].mxu0
  %v633 = vadd.f32 0.0, %v632
  %v634 = vpop.f32.mrb[0].mxu0
  %635 = vmatprep.mubr.bf16.mxu0 0
  %636 = vmatmul.mubr.bf16.gmra.mrb[0].mxu0 %v587
  %v637 = vpop.f32.mrb[0].mxu0
  %v638 = vadd.f32 0.0, %v637
  %v639 = vpop.f32.mrb[0].mxu0
  %v640 = vpop.f32.mrb[0].mxu0
  %v641 = vadd.f32 0.0, %v640
  %v642 = vpop.f32.mrb[0].mxu0
  %643 = vmatprep.mubr.bf16.mxu0 0
  %644 = vmatmul.mubr.bf16.gmra.mrb[0].mxu0 %v590
  %v645 = vpop.f32.mrb[0].mxu0
  %v646 = vadd.f32 0.0, %v645
  %v647 = vpop.f32.mrb[0].mxu0
  %v648 = vpop.f32.mrb[0].mxu0
  %v649 = vadd.f32 0.0, %v648
  %v650 = vpop.f32.mrb[0].mxu0
  %651 = vmatprep.mubr.bf16.mxu0 0
  %652 = vmatmul.mubr.bf16.gmra.mrb[0].mxu0 %v593
  %v653 = vpop.f32.mrb[0].mxu0
  %v654 = vadd.f32 0.0, %v653
  %v655 = vpop.f32.mrb[0].mxu0
  %v656 = vpop.f32.mrb[0].mxu0
  %v657 = vadd.f32 0.0, %v656
  %v658 = vpop.f32.mrb[0].mxu0
  %659 = vdwg.mxu0
  %v660 = vpack.c.bf16 %v633, %v630
  %v661 = vpack.c.bf16 %v641, %v638
  %v662 = vpack.c.bf16 %v649, %v646
  %v663 = vpack.c.bf16 %v657, %v654
  %s664 = scalar_lea.vmem %s3, 128
  %v665 = vld [vmem:[%s664] sm:$0xff]
  %v666 = vld [vmem:[%s664 + $0x8] sm:$0xff]
  %v667 = vld [vmem:[%s664 + $0x10] sm:$0xff]
  %v668 = vld [vmem:[%s664 + $0x18] sm:$0xff]
  %v669 = vld [vmem:[%s664 + $0x20] sm:$0xff]
  %v670 = vld [vmem:[%s664 + $0x28] sm:$0xff]
  %v671 = vld [vmem:[%s664 + $0x30] sm:$0xff]
  %v672 = vld [vmem:[%s664 + $0x38] sm:$0xff]
  %v681 = vunpack.c.l.b16 %v665
  %v682 = vunpack.c.h.b16 %v665
  %v683 = vunpack.c.l.b16 %v666
  %v684 = vunpack.c.h.b16 %v666
  %v685 = vunpack.c.l.b16 %v667
  %v686 = vunpack.c.h.b16 %v667
  %v687 = vunpack.c.l.b16 %v668
  %v688 = vunpack.c.h.b16 %v668
  %v689 = vunpack.c.l.b16 %v669
  %v690 = vunpack.c.h.b16 %v669
  %v691 = vunpack.c.l.b16 %v670
  %v692 = vunpack.c.h.b16 %v670
  %v693 = vunpack.c.l.b16 %v671
  %v694 = vunpack.c.h.b16 %v671
  %v695 = vunpack.c.l.b16 %v672
  %v696 = vunpack.c.h.b16 %v672
  %v697 = vpack.c.b16 %v683, %v681
  %v698 = vpack.c.b16 %v684, %v682
  %v699 = vpack.c.b16 %v687, %v685
  %v700 = vpack.c.b16 %v688, %v686
  %v701 = vpack.c.b16 %v691, %v689
  %v702 = vpack.c.b16 %v692, %v690
  %v703 = vpack.c.b16 %v695, %v693
  %v704 = vpack.c.b16 %v696, %v694
  %v714 = vsel %vm343, %v660, 0
  %v717 = vsel %vm343, %v661, 0
  %v720 = vsel %vm343, %v662, 0
  %v723 = vsel %vm343, %v663, 0
  %725 = vmatprep.subr.bf16.mxu0 %v698
  %726 = vmatpush1.bf16.msra.mxu0 %v697
  %727 = vmatprep.subr.bf16.mxu0 %v700
  %728 = vmatpush1.bf16.msra.mxu0 %v699
  %729 = vmatprep.subr.bf16.mxu0 %v702
  %730 = vmatpush1.bf16.msra.mxu0 %v701
  %731 = vmatprep.subr.bf16.mxu0 %v704
  %732 = vmatpush1.bf16.msra.mxu0 %v703
  %733 = vmatprep.subr.bf16.mxu0 0
  %734 = vmatpush1.bf16.msra.mxu0 0
  %735 = vmatprep.subr.bf16.mxu0 0
  %736 = vmatpush1.bf16.msra.mxu0 0
  %737 = vmatprep.subr.bf16.mxu0 0
  %738 = vmatpush1.bf16.msra.mxu0 0
  %739 = vmatprep.subr.bf16.mxu0 0
  %740 = vmatpush1.bf16.msra.mxu0 0
  %741 = vmatprep.subr.bf16.mxu0 0
  %742 = vmatpush1.bf16.msra.mxu0 0
  %743 = vmatprep.subr.bf16.mxu0 0
  %744 = vmatpush1.bf16.msra.mxu0 0
  %745 = vmatprep.subr.bf16.mxu0 0
  %746 = vmatpush1.bf16.msra.mxu0 0
  %747 = vmatprep.subr.bf16.mxu0 0
  %748 = vmatpush1.bf16.msra.mxu0 0
  %749 = vmatprep.subr.bf16.mxu0 0
  %750 = vmatpush1.bf16.msra.mxu0 0
  %751 = vmatprep.subr.bf16.mxu0 0
  %752 = vmatpush1.bf16.msra.mxu0 0
  %753 = vmatprep.subr.bf16.mxu0 0
  %754 = vmatpush1.bf16.msra.mxu0 0
  %755 = vmatprep.subr.bf16.mxu0 0
  %756 = vmatpush1.bf16.msra.mxu0 0
  %757 = vmatprep.mubr.bf16.mxu0 0
  %758 = vmatmul.mubr.bf16.gmra.mrb[0].mxu0 %v714
  %v759 = vpop.f32.mrb[0].mxu0
  %v760 = vadd.f32 0.0, %v759
  %v761 = vpop.f32.mrb[0].mxu0
  %v762 = vadd.f32 0.0, %v761
  %v763 = vpop.f32.mrb[0].mxu0
  %v764 = vadd.f32 0.0, %v763
  %v765 = vpop.f32.mrb[0].mxu0
  %v766 = vadd.f32 0.0, %v765
  %767 = vmatprep.mubr.bf16.mxu0 0
  %768 = vmatmul.mubr.bf16.gmra.mrb[0].mxu0 %v717
  %v769 = vpop.f32.mrb[0].mxu0
  %v770 = vadd.f32 0.0, %v769
  %v771 = vpop.f32.mrb[0].mxu0
  %v772 = vadd.f32 0.0, %v771
  %v773 = vpop.f32.mrb[0].mxu0
  %v774 = vadd.f32 0.0, %v773
  %v775 = vpop.f32.mrb[0].mxu0
  %v776 = vadd.f32 0.0, %v775
  %777 = vmatprep.mubr.bf16.mxu0 0
  %778 = vmatmul.mubr.bf16.gmra.mrb[0].mxu0 %v720
  %v779 = vpop.f32.mrb[0].mxu0
  %v780 = vadd.f32 0.0, %v779
  %v781 = vpop.f32.mrb[0].mxu0
  %v782 = vadd.f32 0.0, %v781
  %v783 = vpop.f32.mrb[0].mxu0
  %v784 = vadd.f32 0.0, %v783
  %v785 = vpop.f32.mrb[0].mxu0
  %v786 = vadd.f32 0.0, %v785
  %787 = vmatprep.mubr.bf16.mxu0 0
  %788 = vmatmul.mubr.bf16.gmra.mrb[0].mxu0 %v723
  %v789 = vpop.f32.mrb[0].mxu0
  %v790 = vadd.f32 0.0, %v789
  %v791 = vpop.f32.mrb[0].mxu0
  %v792 = vadd.f32 0.0, %v791
  %v793 = vpop.f32.mrb[0].mxu0
  %v794 = vadd.f32 0.0, %v793
  %v795 = vpop.f32.mrb[0].mxu0
  %v796 = vadd.f32 0.0, %v795
  %797 = vdwg.mxu0
  %v798 = vadd.f32 %v516, %v760
  %v799 = vadd.f32 %v518, %v762
  %v800 = vadd.f32 %v520, %v764
  %v801 = vadd.f32 %v522, %v766
  %v802 = vadd.f32 %v526, %v770
  %v803 = vadd.f32 %v528, %v772
  %v804 = vadd.f32 %v530, %v774
  %v805 = vadd.f32 %v532, %v776
  %v806 = vadd.f32 %v536, %v780
  %v807 = vadd.f32 %v538, %v782
  %v808 = vadd.f32 %v540, %v784
  %v809 = vadd.f32 %v542, %v786
  %v810 = vadd.f32 %v546, %v790
  %v811 = vadd.f32 %v548, %v792
  %v812 = vadd.f32 %v550, %v794
  %v813 = vadd.f32 %v552, %v796
  %v814 = vld [vmem:[%s4] sm:$0x3]
  %v816 = vlaneseq
  %v817 = vshrl.u32 %v816, 7
  %v818 = vsub.s32 0, %v817
  %v819 = vrot.slane %v814, %v818
  %v820 = vlaneseq
  %v821 = vshrl.u32 %v820, 7
  %v822 = vsub.s32 1, %v821
  %v823 = vrot.slane %v814, %v822
  %v826 = vadd.f32 %v798, %v819
  %v827 = vadd.f32 %v799, %v823
  %v828 = vadd.f32 %v800, %v819
  %v829 = vadd.f32 %v801, %v823
  %v830 = vadd.f32 %v802, %v819
  %v831 = vadd.f32 %v803, %v823
  %v832 = vadd.f32 %v804, %v819
  %v833 = vadd.f32 %v805, %v823
  %v834 = vadd.f32 %v806, %v819
  %v835 = vadd.f32 %v807, %v823
  %v836 = vadd.f32 %v808, %v819
  %v837 = vadd.f32 %v809, %v823
  %v838 = vadd.f32 %v810, %v819
  %v839 = vadd.f32 %v811, %v823
  %v840 = vadd.f32 %v812, %v819
  %v841 = vadd.f32 %v813, %v823
  %v842 = vpack.c.bf16 %v828, %v826
  %v843 = vpack.c.bf16 %v829, %v827
  %v844 = vpack.c.bf16 %v832, %v830
  %v845 = vpack.c.bf16 %v833, %v831
  %v846 = vpack.c.bf16 %v836, %v834
  %v847 = vpack.c.bf16 %v837, %v835
  %v848 = vpack.c.bf16 %v840, %v838
  %v849 = vpack.c.bf16 %v841, %v839
  %v858 = vunpack.c.l.b16 %v842
  %v859 = vunpack.c.l.b16 %v843
  %v860 = vunpack.c.h.b16 %v842
  %v861 = vunpack.c.h.b16 %v843
  %v862 = vunpack.c.l.b16 %v844
  %v863 = vunpack.c.l.b16 %v845
  %v864 = vunpack.c.h.b16 %v844
  %v865 = vunpack.c.h.b16 %v845
  %v866 = vunpack.c.l.b16 %v846
  %v867 = vunpack.c.l.b16 %v847
  %v868 = vunpack.c.h.b16 %v846
  %v869 = vunpack.c.h.b16 %v847
  %v870 = vunpack.c.l.b16 %v848
  %v871 = vunpack.c.l.b16 %v849
  %v872 = vunpack.c.h.b16 %v848
  %v873 = vunpack.c.h.b16 %v849
  %v874 = vpack.c.b16 %v859, %v858
  %v875 = vpack.c.b16 %v861, %v860
  %v876 = vpack.c.b16 %v863, %v862
  %v877 = vpack.c.b16 %v865, %v864
  %v878 = vpack.c.b16 %v867, %v866
  %v879 = vpack.c.b16 %v869, %v868
  %v880 = vpack.c.b16 %v871, %v870
  %v881 = vpack.c.b16 %v873, %v872
  %890 = vst [vmem:[%s5] sm:$0xff] %v874
  %891 = vst [vmem:[%s5 + $0x8] sm:$0xff] %v875
  %892 = vst [vmem:[%s5 + $0x10] sm:$0xff] %v876
  %893 = vst [vmem:[%s5 + $0x18] sm:$0xff] %v877
  %894 = vst [vmem:[%s5 + $0x20] sm:$0xff] %v878
  %895 = vst [vmem:[%s5 + $0x28] sm:$0xff] %v879
  %896 = vst [vmem:[%s5 + $0x30] sm:$0xff] %v880
  %897 = vst [vmem:[%s5 + $0x38] sm:$0xff] %v881
  %v898 = vunpack.c.l.bf16 %v842
  %v899 = vunpack.c.l.bf16 %v843
  %v900 = vunpack.c.h.bf16 %v842
  %v901 = vunpack.c.h.bf16 %v843
  %v902 = vunpack.c.l.bf16 %v844
  %v903 = vunpack.c.l.bf16 %v845
  %v904 = vunpack.c.h.bf16 %v844
  %v905 = vunpack.c.h.bf16 %v845
  %v906 = vunpack.c.l.bf16 %v846
  %v907 = vunpack.c.l.bf16 %v847
  %v908 = vunpack.c.h.bf16 %v846
  %v909 = vunpack.c.h.bf16 %v847
  %v910 = vunpack.c.l.bf16 %v848
  %v911 = vunpack.c.l.bf16 %v849
  %v912 = vunpack.c.h.bf16 %v848
  %v913 = vunpack.c.h.bf16 %v849
  %v914 = vadd.f32 %v898, %v900
  %v915 = vadd.f32 %v914, %v902
  %v916 = vadd.f32 %v915, %v904
  %v917 = vadd.f32 %v916, %v906
  %v918 = vadd.f32 %v917, %v908
  %v919 = vadd.f32 %v918, %v910
  %v920 = vadd.f32 %v919, %v912
  %v921 = vrot.slane %v920, 4
  %v922 = vadd.f32 %v920, %v921
  %v923 = vrot.slane %v922, 2
  %v924 = vadd.f32 %v922, %v923
  %v925 = vrot.slane %v924, 1
  %v926 = vadd.f32 %v924, %v925
  %v927 = vadd.f32 %v899, %v901
  %v928 = vadd.f32 %v927, %v903
  %v929 = vadd.f32 %v928, %v905
  %v930 = vadd.f32 %v929, %v907
  %v931 = vadd.f32 %v930, %v909
  %v932 = vadd.f32 %v931, %v911
  %v933 = vadd.f32 %v932, %v913
  %v934 = vrot.slane %v933, 4
  %v935 = vadd.f32 %v933, %v934
  %v936 = vrot.slane %v935, 2
  %v937 = vadd.f32 %v935, %v936
  %v938 = vrot.slane %v937, 1
  %v939 = vadd.f32 %v937, %v938
  %v940 = vmul.f32 %v898, %v898
  %v941 = vmul.f32 %v899, %v899
  %v942 = vmul.f32 %v900, %v900
  %v943 = vmul.f32 %v901, %v901
  %v944 = vmul.f32 %v902, %v902
  %v945 = vmul.f32 %v903, %v903
  %v946 = vmul.f32 %v904, %v904
  %v947 = vmul.f32 %v905, %v905
  %v948 = vmul.f32 %v906, %v906
  %v949 = vmul.f32 %v907, %v907
  %v950 = vmul.f32 %v908, %v908
  %v951 = vmul.f32 %v909, %v909
  %v952 = vmul.f32 %v910, %v910
  %v953 = vmul.f32 %v911, %v911
  %v954 = vmul.f32 %v912, %v912
  %v955 = vmul.f32 %v913, %v913
  %v956 = vadd.f32 %v940, %v942
  %v957 = vadd.f32 %v956, %v944
  %v958 = vadd.f32 %v957, %v946
  %v959 = vadd.f32 %v958, %v948
  %v960 = vadd.f32 %v959, %v950
  %v961 = vadd.f32 %v960, %v952
  %v962 = vadd.f32 %v961, %v954
  %v963 = vrot.slane %v962, 4
  %v964 = vadd.f32 %v962, %v963
  %v965 = vrot.slane %v964, 2
  %v966 = vadd.f32 %v964, %v965
  %v967 = vrot.slane %v966, 1
  %v968 = vadd.f32 %v966, %v967
  %v969 = vadd.f32 %v941, %v943
  %v970 = vadd.f32 %v969, %v945
  %v971 = vadd.f32 %v970, %v947
  %v972 = vadd.f32 %v971, %v949
  %v973 = vadd.f32 %v972, %v951
  %v974 = vadd.f32 %v973, %v953
  %v975 = vadd.f32 %v974, %v955
  %v976 = vrot.slane %v975, 4
  %v977 = vadd.f32 %v975, %v976
  %v978 = vrot.slane %v977, 2
  %v979 = vadd.f32 %v977, %v978
  %v980 = vrot.slane %v979, 1
  %v981 = vadd.f32 %v979, %v980
  %vm982 = vcmask 1040384
  %v983 = vsel %vm982, %v926, %v968
  %v984 = vsel %vm982, %v939, %v981
  %v987 = vcombine.low %v983, %v984
  %v989 = vunpack.c.l.s4 1983009808
  %v990 = vunpack.c.0.s8 %v989
  %v991 = vlaneseq
  %v992 = vshrl.u32 %v991, 7
  %v993 = vsub.s32 %v990, %v992
  %v994 = vrot.slane %v987, %v993
  %996 = vst [vmem:[%s6] sm:$0xf] %v994
  // Predicated region
  $region22: #{up_forward.4} parent=0 // pred_check
    _
  $region23: #{up_forward.4} parent=0 // pred_check_branch
    %998 = sbr.rel (0) target = $region25
  $region24: #{up_forward.4} parent=0 // pred_region
    _
  $region25: #{up_forward.4} parent=0 // pred_fallthru
    _
  // Predicated region
  $region26: #{up_forward.4} parent=0 // pred_check
    _
  $region27: #{up_forward.4} parent=0 // pred_check_branch
    %1000 = sbr.rel (0) target = $region29
  $region28: #{up_forward.4} parent=0 // pred_region
    _
  $region29: #{up_forward.4} parent=0 // pred_fallthru
    _
  // Predicated region
  $region30: #{up_forward.4} parent=0 // pred_check
    _
  $region31: #{up_forward.4} parent=0 // pred_check_branch
    %1002 = sbr.rel (0) target = $region33
  $region32: #{up_forward.4} parent=0 // pred_region
    _
  $region33: #{up_forward.4} parent=0 // pred_fallthru
    _
  // Predicated region
  $region34: #{up_forward.4} parent=0 // pred_check
    _
  $region35: #{up_forward.4} parent=0 // pred_check_branch
    %1004 = sbr.rel (0) target = $region37
  $region36: #{up_forward.4} parent=0 // pred_region
    _
  $region37: #{up_forward.4} parent=0 // pred_fallthru
    _

// kernel: tile.48
$region0: #{tile.48}
  #allocation0 [shape = 's32[1]{0}', space=sflag, size = 0x4, scoped, tag = 'scoped memory for tile.48']
  %s0 = inlined_call_operand.vmem [shape: f32[4], index: 0, kind: input, shape index: {}]
  %s1 = inlined_call_operand.vmem [shape: f32[32,4], index: 1, kind: output, shape index: {}]
  // Predicated region
  $region2: #{tile.48} parent=0 // pred_check
    _
  $region3: #{tile.48} parent=0 // pred_check_branch
    %3 = sbr.rel (0) target = $region5
  $region4: #{tile.48} parent=0 // pred_region
    _
  $region5: #{tile.48} parent=0 // pred_fallthru
    _
  %v4 = vld [vmem:[%s0] ss:$0 sm:$0xff]
  %5 = vst [vmem:[%s1] sm:$0xff] %v4
  %s6 = scalar_lea.vmem %s1, 8
  %7 = vst [vmem:[%s6] sm:$0xff] %v4
  %s8 = scalar_lea.vmem %s1, 16
  %9 = vst [vmem:[%s8] sm:$0xff] %v4
  %s10 = scalar_lea.vmem %s1, 24
  %11 = vst [vmem:[%s10] sm:$0xff] %v4

// kernel: tile.49
$region0: #{tile.49}
  %s0 = inlined_call_operand.vmem [shape: f32[32,4], index: 0, kind: input, shape index: {}]
  %s1 = inlined_call_operand.vmem [shape: f32[1,128], index: 1, kind: output, shape index: {}]
  $region1: #{tile.49} parent=0
    #allocation0 [shape = 'u8[4096]{0}', space=vmem, size = 0x1000, scoped, tag = 'scoped mem for output reshape']
    %v2 = vld [vmem:[%s0] sm:$0x1]
    %vm3 = vcmask 31744
    %4 = vst.msk [vmem:[#allocation0] sm:$0x1] %vm3, %v2
    %s5 = scalar_lea.vmem %s0, 31
    %v6 = vld [vmem:[%s5] sm:$0x1]
    %7 = vrot.lane.b32.xlu0 %v6, 124
    %v8 = vpop.permute.xlu0 %7
    %vm9 = vcmask 1048544
    %10 = vst.msk [vmem:[#allocation0] sm:$0x1] %vm9, %v8
    %s11 = scalar_lea.vmem %s0, 30
    %v12 = vld [vmem:[%s11] sm:$0x1]
    %13 = vrot.lane.b32.xlu0 %v12, 120
    %v14 = vpop.permute.xlu0 %13
    %vm15 = vcmask 1015744
    %16 = vst.msk [vmem:[#allocation0] sm:$0x1] %vm15, %v14
    %s17 = scalar_lea.vmem %s0, 29
    %v18 = vld [vmem:[%s17] sm:$0x1]
    %19 = vrot.lane.b32.xlu0 %v18, 116
    %v20 = vpop.permute.xlu0 %19
    %vm21 = vcmask 982944
    %22 = vst.msk [vmem:[#allocation0] sm:$0x1] %vm21, %v20
    %s23 = scalar_lea.vmem %s0, 28
    %v24 = vld [vmem:[%s23] sm:$0x1]
    %25 = vrot.lane.b32.xlu0 %v24, 112
    %v26 = vpop.permute.xlu0 %25
    %vm27 = vcmask 950144
    %28 = vst.msk [vmem:[#allocation0] sm:$0x1] %vm27, %v26
    %s29 = scalar_lea.vmem %s0, 27
    %v30 = vld [vmem:[%s29] sm:$0x1]
    %31 = vrot.lane.b32.xlu0 %v30, 108
    %v32 = vpop.permute.xlu0 %31
    %vm33 = vcmask 917344
    %34 = vst.msk [vmem:[#allocation0] sm:$0x1] %vm33, %v32
    %s35 = scalar_lea.vmem %s0, 26
    %v36 = vld [vmem:[%s35] sm:$0x1]
    %37 = vrot.lane.b32.xlu0 %v36, 104
    %v38 = vpop.permute.xlu0 %37
    %vm39 = vcmask 884544
    %40 = vst.msk [vmem:[#allocation0] sm:$0x1] %vm39, %v38
    %s41 = scalar_lea.vmem %s0, 25
    %v42 = vld [vmem:[%s41] sm:$0x1]
    %43 = vrot.lane.b32.xlu0 %v42, 100
    %v44 = vpop.permute.xlu0 %43
    %vm45 = vcmask 851744
    %46 = vst.msk [vmem:[#allocation0] sm:$0x1] %vm45, %v44
    %s47 = scalar_lea.vmem %s0, 24
    %v48 = vld [vmem:[%s47] sm:$0x1]
    %49 = vrot.lane.b32.xlu0 %v48, 96
    %v50 = vpop.permute.xlu0 %49
    %vm51 = vcmask 818944
    %52 = vst.msk [vmem:[#allocation0] sm:$0x1] %vm51, %v50
    %s53 = scalar_lea.vmem %s0, 23
    %v54 = vld [vmem:[%s53] sm:$0x1]
    %55 = vrot.lane.b32.xlu0 %v54, 92
    %v56 = vpop.permute.xlu0 %55
    %vm57 = vcmask 786144
    %58 = vst.msk [vmem:[#allocation0] sm:$0x1] %vm57, %v56
    %s59 = scalar_lea.vmem %s0, 22
    %v60 = vld [vmem:[%s59] sm:$0x1]
    %61 = vrot.lane.b32.xlu0 %v60, 88
    %v62 = vpop.permute.xlu0 %61
    %vm63 = vcmask 753344
    %64 = vst.msk [vmem:[#allocation0] sm:$0x1] %vm63, %v62
    %s65 = scalar_lea.vmem %s0, 21
    %v66 = vld [vmem:[%s65] sm:$0x1]
    %67 = vrot.lane.b32.xlu0 %v66, 84
    %v68 = vpop.permute.xlu0 %67
    %vm69 = vcmask 720544
    %70 = vst.msk [vmem:[#allocation0] sm:$0x1] %vm69, %v68
    %s71 = scalar_lea.vmem %s0, 20
    %v72 = vld [vmem:[%s71] sm:$0x1]
    %73 = vrot.lane.b32.xlu0 %v72, 80
    %v74 = vpop.permute.xlu0 %73
    %vm75 = vcmask 687744
    %76 = vst.msk [vmem:[#allocation0] sm:$0x1] %vm75, %v74
    %s77 = scalar_lea.vmem %s0, 19
    %v78 = vld [vmem:[%s77] sm:$0x1]
    %79 = vrot.lane.b32.xlu0 %v78, 76
    %v80 = vpop.permute.xlu0 %79
    %vm81 = vcmask 654944
    %82 = vst.msk [vmem:[#allocation0] sm:$0x1] %vm81, %v80
    %s83 = scalar_lea.vmem %s0, 18
    %v84 = vld [vmem:[%s83] sm:$0x1]
    %85 = vrot.lane.b32.xlu0 %v84, 72
    %v86 = vpop.permute.xlu0 %85
    %vm87 = vcmask 622144
    %88 = vst.msk [vmem:[#allocation0] sm:$0x1] %vm87, %v86
    %s89 = scalar_lea.vmem %s0, 17
    %v90 = vld [vmem:[%s89] sm:$0x1]
    %91 = vrot.lane.b32.xlu0 %v90, 68
    %v92 = vpop.permute.xlu0 %91
    %vm93 = vcmask 589344
    %94 = vst.msk [vmem:[#allocation0] sm:$0x1] %vm93, %v92
    %s95 = scalar_lea.vmem %s0, 16
    %v96 = vld [vmem:[%s95] sm:$0x1]
    %97 = vrot.lane.b32.xlu0 %v96, 64
    %v98 = vpop.permute.xlu0 %97
    %vm99 = vcmask 556544
    %100 = vst.msk [vmem:[#allocation0] sm:$0x1] %vm99, %v98
    %s101 = scalar_lea.vmem %s0, 15
    %v102 = vld [vmem:[%s101] sm:$0x1]
    %103 = vrot.lane.b32.xlu0 %v102, 60
    %v104 = vpop.permute.xlu0 %103
    %vm105 = vcmask 523744
    %106 = vst.msk [vmem:[#allocation0] sm:$0x1] %vm105, %v104
    %s107 = scalar_lea.vmem %s0, 14
    %v108 = vld [vmem:[%s107] sm:$0x1]
    %109 = vrot.lane.b32.xlu0 %v108, 56
    %v110 = vpop.permute.xlu0 %109
    %vm111 = vcmask 490944
    %112 = vst.msk [vmem:[#allocation0] sm:$0x1] %vm111, %v110
    %s113 = scalar_lea.vmem %s0, 13
    %v114 = vld [vmem:[%s113] sm:$0x1]
    %115 = vrot.lane.b32.xlu0 %v114, 52
    %v116 = vpop.permute.xlu0 %115
    %vm117 = vcmask 458144
    %118 = vst.msk [vmem:[#allocation0] sm:$0x1] %vm117, %v116
    %s119 = scalar_lea.vmem %s0, 12
    %v120 = vld [vmem:[%s119] sm:$0x1]
    %121 = vrot.lane.b32.xlu0 %v120, 48
    %v122 = vpop.permute.xlu0 %121
    %vm123 = vcmask 425344
    %124 = vst.msk [vmem:[#allocation0] sm:$0x1] %vm123, %v122
    %s125 = scalar_lea.vmem %s0, 11
    %v126 = vld [vmem:[%s125] sm:$0x1]
    %127 = vrot.lane.b32.xlu0 %v126, 44
    %v128 = vpop.permute.xlu0 %127
    %vm129 = vcmask 392544
    %130 = vst.msk [vmem:[#allocation0] sm:$0x1] %vm129, %v128
    %s131 = scalar_lea.vmem %s0, 10
    %v132 = vld [vmem:[%s131] sm:$0x1]
    %133 = vrot.lane.b32.xlu0 %v132, 40
    %v134 = vpop.permute.xlu0 %133
    %vm135 = vcmask 359744
    %136 = vst.msk [vmem:[#allocation0] sm:$0x1] %vm135, %v134
    %s137 = scalar_lea.vmem %s0, 9
    %v138 = vld [vmem:[%s137] sm:$0x1]
    %139 = vrot.lane.b32.xlu0 %v138, 36
    %v140 = vpop.permute.xlu0 %139
    %vm141 = vcmask 326944
    %142 = vst.msk [vmem:[#allocation0] sm:$0x1] %vm141, %v140
    %s143 = scalar_lea.vmem %s0, 8
    %v144 = vld [vmem:[%s143] sm:$0x1]
    %145 = vrot.lane.b32.xlu0 %v144, 32
    %v146 = vpop.permute.xlu0 %145
    %vm147 = vcmask 294144
    %148 = vst.msk [vmem:[#allocation0] sm:$0x1] %vm147, %v146
    %s149 = scalar_lea.vmem %s0, 7
    %v150 = vld [vmem:[%s149] sm:$0x1]
    %151 = vrot.lane.b32.xlu0 %v150, 28
    %v152 = vpop.permute.xlu0 %151
    %vm153 = vcmask 261344
    %154 = vst.msk [vmem:[#allocation0] sm:$0x1] %vm153, %v152
    %s155 = scalar_lea.vmem %s0, 6
    %v156 = vld [vmem:[%s155] sm:$0x1]
    %157 = vrot.lane.b32.xlu0 %v156, 24
    %v158 = vpop.permute.xlu0 %157
    %vm159 = vcmask 228544
    %160 = vst.msk [vmem:[#allocation0] sm:$0x1] %vm159, %v158
    %s161 = scalar_lea.vmem %s0, 5
    %v162 = vld [vmem:[%s161] sm:$0x1]
    %163 = vrot.lane.b32.xlu0 %v162, 20
    %v164 = vpop.permute.xlu0 %163
    %vm165 = vcmask 195744
    %166 = vst.msk [vmem:[#allocation0] sm:$0x1] %vm165, %v164
    %s167 = scalar_lea.vmem %s0, 4
    %v168 = vld [vmem:[%s167] sm:$0x1]
    %169 = vrot.lane.b32.xlu0 %v168, 16
    %v170 = vpop.permute.xlu0 %169
    %vm171 = vcmask 162944
    %172 = vst.msk [vmem:[#allocation0] sm:$0x1] %vm171, %v170
    %s173 = scalar_lea.vmem %s0, 3
    %v174 = vld [vmem:[%s173] sm:$0x1]
    %175 = vrot.lane.b32.xlu0 %v174, 12
    %v176 = vpop.permute.xlu0 %175
    %vm177 = vcmask 130144
    %178 = vst.msk [vmem:[#allocation0] sm:$0x1] %vm177, %v176
    %s179 = scalar_lea.vmem %s0, 2
    %v180 = vld [vmem:[%s179] sm:$0x1]
    %181 = vrot.lane.b32.xlu0 %v180, 8
    %v182 = vpop.permute.xlu0 %181
    %vm183 = vcmask 97344
    %184 = vst.msk [vmem:[#allocation0] sm:$0x1] %vm183, %v182
    %s185 = scalar_lea.vmem %s0, 1
    %v186 = vld [vmem:[%s185] sm:$0x1]
    %187 = vrot.lane.b32.xlu0 %v186, 4
    %v188 = vpop.permute.xlu0 %187
    %vm189 = vcmask 64544
    %190 = vst.msk [vmem:[#allocation0] sm:$0x1] %vm189, %v188
    %s192 = sshllo.u32 0, 1
    %v194 = vld [vmem:[#allocation0] sm:%s192]
    %s195 = sshllo.u32 0, 1
    %196 = vst [vmem:[%s1] sm:%s195] %v194

// kernel: up_forward.5
$region0: #{up_forward.5}
  #allocation0 [shape = 'u32[]', space=smem, size = 0x4, offset = 0x4, fixed_abs, tag = 'smem constant byte address 0x4 - core index']
  #allocation1 [shape = 'u32[144,128]{1,0:T(1,128)}', space=vmem, size = 0x12000, scoped, tag = 'internal scratch']
  #allocation2 [shape = 'f32[66,256]{1,0:T(8,128)}', space=vmem, size = 0x12000, scoped, tag = 'scratch operand']
  %s0 = inlined_call_operand.vmem [shape: bf16[64,256], index: 0, kind: input, shape index: {}]
  %s1 = inlined_call_operand.vmem [shape: f32[2,256], index: 1, kind: input, shape index: {}]
  %s2 = inlined_call_operand.vmem [shape: bf16[3,256,128], index: 2, kind: input, shape index: {}]
  %s3 = inlined_call_operand.vmem [shape: f32[1,128], index: 3, kind: input, shape index: {}]
  %s4 = inlined_call_operand.vmem [shape: f32[64,128], index: 4, kind: output, shape index: {}]
  %s5 = sld [smem:[#allocation0]]
  $region26: #{up_forward.5} parent=0
    _
  %s7 = ssub.s32 1, %s5
  %s8 = scalar_select 0, %s7, %s5
  // Predicated region
  $region2: #{up_forward.5} parent=0 // pred_check
    _
  $region3: #{up_forward.5} parent=0 // pred_check_branch
    %10 = sbr.rel (0) target = $region5
  $region4: #{up_forward.5} parent=0 // pred_region
    _
  $region5: #{up_forward.5} parent=0 // pred_fallthru
    _
  // Predicated region
  $region6: #{up_forward.5} parent=0 // pred_check
    _
  $region7: #{up_forward.5} parent=0 // pred_check_branch
    %12 = sbr.rel (0) target = $region9
  $region8: #{up_forward.5} parent=0 // pred_region
    _
  $region9: #{up_forward.5} parent=0 // pred_fallthru
    _
  // Predicated region
  $region10: #{up_forward.5} parent=0 // pred_check
    _
  $region11: #{up_forward.5} parent=0 // pred_check_branch
    %14 = sbr.rel (0) target = $region13
  $region12: #{up_forward.5} parent=0 // pred_region
    _
  $region13: #{up_forward.5} parent=0 // pred_fallthru
    _
  // Predicated region
  $region14: #{up_forward.5} parent=0 // pred_check
    _
  $region15: #{up_forward.5} parent=0 // pred_check_branch
    %16 = sbr.rel (0) target = $region17
  $region16: #{up_forward.5} parent=0 // pred_region
    _
  $region17: #{up_forward.5} parent=0 // pred_fallthru
    _
  %v18 = vld [vmem:[%s0] sm:$0xff]
  %v19 = vld [vmem:[%s0 + $0x8] sm:$0xff]
  %v20 = vld [vmem:[%s0 + $0x10] sm:$0xff]
  %v21 = vld [vmem:[%s0 + $0x18] sm:$0xff]
  %v22 = vld [vmem:[%s0 + $0x20] sm:$0xff]
  %v23 = vld [vmem:[%s0 + $0x28] sm:$0xff]
  %v24 = vld [vmem:[%s0 + $0x30] sm:$0xff]
  %v25 = vld [vmem:[%s0 + $0x38] sm:$0xff]
  %v26 = vunpack.c.l.bf16 %v18
  %v27 = vunpack.c.h.bf16 %v18
  %v28 = vunpack.c.l.bf16 %v19
  %v29 = vunpack.c.h.bf16 %v19
  %v30 = vunpack.c.l.bf16 %v20
  %v31 = vunpack.c.h.bf16 %v20
  %v32 = vunpack.c.l.bf16 %v21
  %v33 = vunpack.c.h.bf16 %v21
  %v34 = vunpack.c.l.bf16 %v22
  %v35 = vunpack.c.h.bf16 %v22
  %v36 = vunpack.c.l.bf16 %v23
  %v37 = vunpack.c.h.bf16 %v23
  %v38 = vunpack.c.l.bf16 %v24
  %v39 = vunpack.c.h.bf16 %v24
  %v40 = vunpack.c.l.bf16 %v25
  %v41 = vunpack.c.h.bf16 %v25
  %v42 = vld [vmem:[%s1] sm:$0xf]
  %v44 = vlaneseq
  %v45 = vshrl.u32 %v44, 7
  %v46 = vsub.s32 0, %v45
  %v47 = vrot.slane %v42, %v46
  %v48 = vlaneseq
  %v49 = vshrl.u32 %v48, 7
  %v50 = vsub.s32 2, %v49
  %v51 = vrot.slane %v42, %v50
  %v54 = vlaneseq
  %v55 = vshrl.u32 %v54, 7
  %v56 = vsub.s32 0, %v55
  %v57 = vrot.slane %v47, %v56
  %v58 = vlaneseq
  %v59 = vshrl.u32 %v58, 7
  %v60 = vsub.s32 0, %v59
  %v61 = vrot.slane %v51, %v60
  %v62 = vmul.f32 %v26, %v57
  %v63 = vmul.f32 %v27, %v61
  %v64 = vmul.f32 %v28, %v57
  %v65 = vmul.f32 %v29, %v61
  %v66 = vmul.f32 %v30, %v57
  %v67 = vmul.f32 %v31, %v61
  %v68 = vmul.f32 %v32, %v57
  %v69 = vmul.f32 %v33, %v61
  %v70 = vmul.f32 %v34, %v57
  %v71 = vmul.f32 %v35, %v61
  %v72 = vmul.f32 %v36, %v57
  %v73 = vmul.f32 %v37, %v61
  %v74 = vmul.f32 %v38, %v57
  %v75 = vmul.f32 %v39, %v61
  %v76 = vmul.f32 %v40, %v57
  %v77 = vmul.f32 %v41, %v61
  %v78 = vlaneseq
  %v79 = vshrl.u32 %v78, 7
  %v80 = vsub.s32 1, %v79
  %v81 = vrot.slane %v42, %v80
  %v82 = vlaneseq
  %v83 = vshrl.u32 %v82, 7
  %v84 = vsub.s32 3, %v83
  %v85 = vrot.slane %v42, %v84
  %v88 = vlaneseq
  %v89 = vshrl.u32 %v88, 7
  %v90 = vsub.s32 1, %v89
  %v91 = vrot.slane %v81, %v90
  %v92 = vlaneseq
  %v93 = vshrl.u32 %v92, 7
  %v94 = vsub.s32 1, %v93
  %v95 = vrot.slane %v85, %v94
  %v96 = vadd.f32 %v62, %v91
  %v97 = vadd.f32 %v63, %v95
  %v98 = vadd.f32 %v64, %v91
  %v99 = vadd.f32 %v65, %v95
  %v100 = vadd.f32 %v66, %v91
  %v101 = vadd.f32 %v67, %v95
  %v102 = vadd.f32 %v68, %v91
  %v103 = vadd.f32 %v69, %v95
  %v104 = vadd.f32 %v70, %v91
  %v105 = vadd.f32 %v71, %v95
  %v106 = vadd.f32 %v72, %v91
  %v107 = vadd.f32 %v73, %v95
  %v108 = vadd.f32 %v74, %v91
  %v109 = vadd.f32 %v75, %v95
  %v110 = vadd.f32 %v76, %v91
  %v111 = vadd.f32 %v77, %v95
  %v112 = vmul.f32 %v96, 0.5
  %v113 = vmul.f32 %v97, 0.5
  %v114 = vmul.f32 %v98, 0.5
  %v115 = vmul.f32 %v99, 0.5
  %v116 = vmul.f32 %v100, 0.5
  %v117 = vmul.f32 %v101, 0.5
  %v118 = vmul.f32 %v102, 0.5
  %v119 = vmul.f32 %v103, 0.5
  %v120 = vmul.f32 %v104, 0.5
  %v121 = vmul.f32 %v105, 0.5
  %v122 = vmul.f32 %v106, 0.5
  %v123 = vmul.f32 %v107, 0.5
  %v124 = vmul.f32 %v108, 0.5
  %v125 = vmul.f32 %v109, 0.5
  %v126 = vmul.f32 %v110, 0.5
  %v127 = vmul.f32 %v111, 0.5
  %v128 = vmul.f32 %v96, 0.70710677
  %v129 = vmul.f32 %v97, 0.70710677
  %v130 = vmul.f32 %v98, 0.70710677
  %v131 = vmul.f32 %v99, 0.70710677
  %v132 = vmul.f32 %v100, 0.70710677
  %v133 = vmul.f32 %v101, 0.70710677
  %v134 = vmul.f32 %v102, 0.70710677
  %v135 = vmul.f32 %v103, 0.70710677
  %v136 = vmul.f32 %v104, 0.70710677
  %v137 = vmul.f32 %v105, 0.70710677
  %v138 = vmul.f32 %v106, 0.70710677
  %v139 = vmul.f32 %v107, 0.70710677
  %v140 = vmul.f32 %v108, 0.70710677
  %v141 = vmul.f32 %v109, 0.70710677
  %v142 = vmul.f32 %v110, 0.70710677
  %v143 = vmul.f32 %v111, 0.70710677
  %v144 = verf.f32.pop %v128
  %v145 = verf.f32.pop %v129
  %v146 = verf.f32.pop %v130
  %v147 = verf.f32.pop %v131
  %v148 = verf.f32.pop %v132
  %v149 = verf.f32.pop %v133
  %v150 = verf.f32.pop %v134
  %v151 = verf.f32.pop %v135
  %v152 = verf.f32.pop %v136
  %v153 = verf.f32.pop %v137
  %v154 = verf.f32.pop %v138
  %v155 = verf.f32.pop %v139
  %v156 = verf.f32.pop %v140
  %v157 = verf.f32.pop %v141
  %v158 = verf.f32.pop %v142
  %v159 = verf.f32.pop %v143
  %v160 = vadd.f32 %v144, 1.0
  %v161 = vadd.f32 %v145, 1.0
  %v162 = vadd.f32 %v146, 1.0
  %v163 = vadd.f32 %v147, 1.0
  %v164 = vadd.f32 %v148, 1.0
  %v165 = vadd.f32 %v149, 1.0
  %v166 = vadd.f32 %v150, 1.0
  %v167 = vadd.f32 %v151, 1.0
  %v168 = vadd.f32 %v152, 1.0
  %v169 = vadd.f32 %v153, 1.0
  %v170 = vadd.f32 %v154, 1.0
  %v171 = vadd.f32 %v155, 1.0
  %v172 = vadd.f32 %v156, 1.0
  %v173 = vadd.f32 %v157, 1.0
  %v174 = vadd.f32 %v158, 1.0
  %v175 = vadd.f32 %v159, 1.0
  %v176 = vmul.f32 %v112, %v160
  %v177 = vmul.f32 %v113, %v161
  %v178 = vmul.f32 %v114, %v162
  %v179 = vmul.f32 %v115, %v163
  %v180 = vmul.f32 %v116, %v164
  %v181 = vmul.f32 %v117, %v165
  %v182 = vmul.f32 %v118, %v166
  %v183 = vmul.f32 %v119, %v167
  %v184 = vmul.f32 %v120, %v168
  %v185 = vmul.f32 %v121, %v169
  %v186 = vmul.f32 %v122, %v170
  %v187 = vmul.f32 %v123, %v171
  %v188 = vmul.f32 %v124, %v172
  %v189 = vmul.f32 %v125, %v173
  %v190 = vmul.f32 %v126, %v174
  %v191 = vmul.f32 %v127, %v175
  %v192 = vpack.c.bf16 %v178, %v176
  %v193 = vpack.c.bf16 %v179, %v177
  %v194 = vpack.c.bf16 %v182, %v180
  %v195 = vpack.c.bf16 %v183, %v181
  %v196 = vpack.c.bf16 %v186, %v184
  %v197 = vpack.c.bf16 %v187, %v185
  %v198 = vpack.c.bf16 %v190, %v188
  %v199 = vpack.c.bf16 %v191, %v189
  %vm216 = vcmask 1040384
  %v217 = vrot.slane %v176, 7
  %v218 = vrot.slane %v177, 7
  %v219 = vrot.slane %v178, 7
  %v220 = vsel %vm216, %v217, %v219
  %v221 = vrot.slane %v179, 7
  %v222 = vsel %vm216, %v218, %v221
  %v223 = vrot.slane %v180, 7
  %v224 = vsel %vm216, %v219, %v223
  %v225 = vrot.slane %v181, 7
  %v226 = vsel %vm216, %v221, %v225
  %v227 = vrot.slane %v182, 7
  %v228 = vsel %vm216, %v223, %v227
  %v229 = vrot.slane %v183, 7
  %v230 = vsel %vm216, %v225, %v229
  %v231 = vrot.slane %v184, 7
  %v232 = vsel %vm216, %v227, %v231
  %v233 = vrot.slane %v185, 7
  %v234 = vsel %vm216, %v229, %v233
  %v235 = vrot.slane %v186, 7
  %v236 = vsel %vm216, %v231, %v235
  %v237 = vrot.slane %v187, 7
  %v238 = vsel %vm216, %v233, %v237
  %v239 = vrot.slane %v188, 7
  %v240 = vsel %vm216, %v235, %v239
  %v241 = vrot.slane %v189, 7
  %v242 = vsel %vm216, %v237, %v241
  %v243 = vrot.slane %v190, 7
  %v244 = vsel %vm216, %v239, %v243
  %v245 = vrot.slane %v191, 7
  %v246 = vsel %vm216, %v241, %v245
  %265 = vst [vmem:[#allocation2] sm:$0xfe] %v217
  %266 = vst [vmem:[#allocation2 + $0x8] sm:$0xfe] %v218
  %267 = vst [vmem:[#allocation2 + $0x10] sm:$0xff] %v220
  %268 = vst [vmem:[#allocation2 + $0x18] sm:$0xff] %v222
  %269 = vst [vmem:[#allocation2 + $0x20] sm:$0xff] %v224
  %270 = vst [vmem:[#allocation2 + $0x28] sm:$0xff] %v226
  %271 = vst [vmem:[#allocation2 + $0x30] sm:$0xff] %v228
  %272 = vst [vmem:[#allocation2 + $0x38] sm:$0xff] %v230
  %273 = vst [vmem:[#allocation2 + $0x40] sm:$0xff] %v232
  %274 = vst [vmem:[#allocation2 + $0x48] sm:$0xff] %v234
  %275 = vst [vmem:[#allocation2 + $0x50] sm:$0xff] %v236
  %276 = vst [vmem:[#allocation2 + $0x58] sm:$0xff] %v238
  %277 = vst [vmem:[#allocation2 + $0x60] sm:$0xff] %v240
  %278 = vst [vmem:[#allocation2 + $0x68] sm:$0xff] %v242
  %279 = vst [vmem:[#allocation2 + $0x70] sm:$0xff] %v244
  %280 = vst [vmem:[#allocation2 + $0x78] sm:$0xff] %v246
  %281 = vst [vmem:[#allocation2 + $0x80] sm:$0x1] %v243
  %282 = vst [vmem:[#allocation2 + $0x88] sm:$0x1] %v245
  %v283 = vlaneseq
  %v284 = vshrl.u32 %v283, 7
  %v285 = vadd.s32 %v284, 8
  %v286 = vadd.s32 %v284, 16
  %v287 = vadd.s32 %v284, 24
  %v288 = vadd.s32 %v284, 32
  %v289 = vadd.s32 %v284, 40
  %v290 = vadd.s32 %v284, 48
  %v291 = vadd.s32 %v284, 56
  %s292 = scalar_lea.vmem %s2, 128
  %v293 = vld [vmem:[%s292] sm:$0xf]
  %v294 = vld [vmem:[%s292 + $0x4] sm:$0xf]
  %v295 = vld [vmem:[%s292 + $0x8] sm:$0xf]
  %v296 = vld [vmem:[%s292 + $0xc] sm:$0xf]
  %v297 = vld [vmem:[%s292 + $0x10] sm:$0xf]
  %v298 = vld [vmem:[%s292 + $0x14] sm:$0xf]
  %v299 = vld [vmem:[%s292 + $0x18] sm:$0xf]
  %v300 = vld [vmem:[%s292 + $0x1c] sm:$0xf]
  %v301 = vld [vmem:[%s292 + $0x20] sm:$0xf]
  %v302 = vld [vmem:[%s292 + $0x24] sm:$0xf]
  %v303 = vld [vmem:[%s292 + $0x28] sm:$0xf]
  %v304 = vld [vmem:[%s292 + $0x2c] sm:$0xf]
  %v305 = vld [vmem:[%s292 + $0x30] sm:$0xf]
  %v306 = vld [vmem:[%s292 + $0x34] sm:$0xf]
  %v307 = vld [vmem:[%s292 + $0x38] sm:$0xf]
  %v308 = vld [vmem:[%s292 + $0x3c] sm:$0xf]
  %v309 = vld [vmem:[%s292 + $0x40] sm:$0xf]
  %v310 = vld [vmem:[%s292 + $0x44] sm:$0xf]
  %v311 = vld [vmem:[%s292 + $0x48] sm:$0xf]
  %v312 = vld [vmem:[%s292 + $0x4c] sm:$0xf]
  %v313 = vld [vmem:[%s292 + $0x50] sm:$0xf]
  %v314 = vld [vmem:[%s292 + $0x54] sm:$0xf]
  %v315 = vld [vmem:[%s292 + $0x58] sm:$0xf]
  %v316 = vld [vmem:[%s292 + $0x5c] sm:$0xf]
  %v317 = vld [vmem:[%s292 + $0x60] sm:$0xf]
  %v318 = vld [vmem:[%s292 + $0x64] sm:$0xf]
  %v319 = vld [vmem:[%s292 + $0x68] sm:$0xf]
  %v320 = vld [vmem:[%s292 + $0x6c] sm:$0xf]
  %v321 = vld [vmem:[%s292 + $0x70] sm:$0xf]
  %v322 = vld [vmem:[%s292 + $0x74] sm:$0xf]
  %v323 = vld [vmem:[%s292 + $0x78] sm:$0xf]
  %v324 = vld [vmem:[%s292 + $0x7c] sm:$0xf]
  %vm325 = vcmp.lt.s32.totalorder %v284, 0
  %v326 = vsub.s32 0, %v284
  %v327 = vsel %vm325, %v326, %v284
  %v328 = vshrl.u32 %v327, 5
  %v329 = vand.u32 %v327, 31
  %v330 = vsub.s32 0, %v329
  %v331 = vsel %vm325, %v330, %v329
  %vm332 = vcmp.lt.s32.totalorder %v285, 0
  %v333 = vsub.s32 0, %v285
  %v334 = vsel %vm332, %v333, %v285
  %v335 = vshrl.u32 %v334, 5
  %v336 = vand.u32 %v334, 31
  %v337 = vsub.s32 0, %v336
  %v338 = vsel %vm332, %v337, %v336
  %vm339 = vcmp.lt.s32.totalorder %v286, 0
  %v340 = vsub.s32 0, %v286
  %v341 = vsel %vm339, %v340, %v286
  %v342 = vshrl.u32 %v341, 5
  %v343 = vand.u32 %v341, 31
  %v344 = vsub.s32 0, %v343
  %v345 = vsel %vm339, %v344, %v343
  %vm346 = vcmp.lt.s32.totalorder %v287, 0
  %v347 = vsub.s32 0, %v287
  %v348 = vsel %vm346, %v347, %v287
  %v349 = vshrl.u32 %v348, 5
  %v350 = vand.u32 %v348, 31
  %v351 = vsub.s32 0, %v350
  %v352 = vsel %vm346, %v351, %v350
  %vm353 = vcmp.lt.s32.totalorder %v288, 0
  %v354 = vsub.s32 0, %v288
  %v355 = vsel %vm353, %v354, %v288
  %v356 = vshrl.u32 %v355, 5
  %v357 = vand.u32 %v355, 31
  %v358 = vsub.s32 0, %v357
  %v359 = vsel %vm353, %v358, %v357
  %vm360 = vcmp.lt.s32.totalorder %v289, 0
  %v361 = vsub.s32 0, %v289
  %v362 = vsel %vm360, %v361, %v289
  %v363 = vshrl.u32 %v362, 5
  %v364 = vand.u32 %v362, 31
  %v365 = vsub.s32 0, %v364
  %v366 = vsel %vm360, %v365, %v364
  %vm367 = vcmp.lt.s32.totalorder %v290, 0
  %v368 = vsub.s32 0, %v290
  %v369 = vsel %vm367, %v368, %v290
  %v370 = vshrl.u32 %v369, 5
  %v371 = vand.u32 %v369, 31
  %v372 = vsub.s32 0, %v371
  %v373 = vsel %vm367, %v372, %v371
  %vm374 = vcmp.lt.s32.totalorder %v291, 0
  %v375 = vsub.s32 0, %v291
  %v376 = vsel %vm374, %v375, %v291
  %v377 = vshrl.u32 %v376, 5
  %v378 = vand.u32 %v376, 31
  %v379 = vsub.s32 0, %v378
  %v380 = vsel %vm374, %v379, %v378
  %vm381 = vcmp.ne.s32.totalorder %v331, 0
  %vm382 = vcmp.ne.s32.totalorder %v338, 0
  %vm383 = vcmp.ne.s32.totalorder %v345, 0
  %vm384 = vcmp.ne.s32.totalorder %v352, 0
  %vm385 = vcmp.ne.s32.totalorder %v359, 0
  %vm386 = vcmp.ne.s32.totalorder %v366, 0
  %vm387 = vcmp.ne.s32.totalorder %v373, 0
  %vm388 = vcmp.ne.s32.totalorder %v380, 0
  %vm389 = vcmp.lt.s32.totalorder %v331, 0
  %vm390 = vcmp.lt.s32.totalorder %v338, 0
  %vm391 = vcmp.lt.s32.totalorder %v345, 0
  %vm392 = vcmp.lt.s32.totalorder %v352, 0
  %vm393 = vcmp.lt.s32.totalorder %v359, 0
  %vm394 = vcmp.lt.s32.totalorder %v366, 0
  %vm395 = vcmp.lt.s32.totalorder %v373, 0
  %vm396 = vcmp.lt.s32.totalorder %v380, 0
  %vm397 = vmand %vm389, %vm381
  %vm398 = vmand %vm390, %vm382
  %vm399 = vmand %vm391, %vm383
  %vm400 = vmand %vm392, %vm384
  %vm401 = vmand %vm393, %vm385
  %vm402 = vmand %vm394, %vm386
  %vm403 = vmand %vm395, %vm387
  %vm404 = vmand %vm396, %vm388
  %v405 = vadd.s32 %v331, 32
  %v406 = vadd.s32 %v338, 32
  %v407 = vadd.s32 %v345, 32
  %v408 = vadd.s32 %v352, 32
  %v409 = vadd.s32 %v359, 32
  %v410 = vadd.s32 %v366, 32
  %v411 = vadd.s32 %v373, 32
  %v412 = vadd.s32 %v380, 32
  %v413 = vsel %vm397, %v405, %v331
  %v414 = vsel %vm398, %v406, %v338
  %v415 = vsel %vm399, %v407, %v345
  %v416 = vsel %vm400, %v408, %v352
  %v417 = vsel %vm401, %v409, %v359
  %v418 = vsel %vm402, %v410, %v366
  %v419 = vsel %vm403, %v411, %v373
  %v420 = vsel %vm404, %v412, %v380
  %vm421 = vcmp.eq.s32.totalorder %v413, 0
  %vm422 = vcmp.eq.s32.totalorder %v414, 0
  %vm423 = vcmp.eq.s32.totalorder %v415, 0
  %vm424 = vcmp.eq.s32.totalorder %v416, 0
  %vm425 = vcmp.eq.s32.totalorder %v417, 0
  %vm426 = vcmp.eq.s32.totalorder %v418, 0
  %vm427 = vcmp.eq.s32.totalorder %v419, 0
  %vm428 = vcmp.eq.s32.totalorder %v420, 0
  %v429 = vld [vmem:[#allocation2] sm:$0xff]
  %v430 = vld [vmem:[#allocation2 + $0x8] sm:$0xff]
  %v431 = vld [vmem:[#allocation2 + $0x10] sm:$0xff]
  %v432 = vld [vmem:[#allocation2 + $0x18] sm:$0xff]
  %v433 = vld [vmem:[#allocation2 + $0x20] sm:$0xff]
  %v434 = vld [vmem:[#allocation2 + $0x28] sm:$0xff]
  %v435 = vld [vmem:[#allocation2 + $0x30] sm:$0xff]
  %v436 = vld [vmem:[#allocation2 + $0x38] sm:$0xff]
  %v437 = vld [vmem:[#allocation2 + $0x40] sm:$0xff]
  %v438 = vld [vmem:[#allocation2 + $0x48] sm:$0xff]
  %v439 = vld [vmem:[#allocation2 + $0x50] sm:$0xff]
  %v440 = vld [vmem:[#allocation2 + $0x58] sm:$0xff]
  %v441 = vld [vmem:[#allocation2 + $0x60] sm:$0xff]
  %v442 = vld [vmem:[#allocation2 + $0x68] sm:$0xff]
  %v443 = vld [vmem:[#allocation2 + $0x70] sm:$0xff]
  %v444 = vld [vmem:[#allocation2 + $0x78] sm:$0xff]
  %v445 = vsel %vm421, 1, 0
  %v446 = vsel %vm422, 1, 0
  %v447 = vsel %vm423, 1, 0
  %v448 = vsel %vm424, 1, 0
  %v449 = vsel %vm425, 1, 0
  %v450 = vsel %vm426, 1, 0
  %v451 = vsel %vm427, 1, 0
  %v452 = vsel %vm428, 1, 0
  %vm453 = vcmp.eq.s32.totalorder %v445, 1
  %vm454 = vcmp.eq.s32.totalorder %v446, 1
  %vm455 = vcmp.eq.s32.totalorder %v447, 1
  %vm456 = vcmp.eq.s32.totalorder %v448, 1
  %vm457 = vcmp.eq.s32.totalorder %v449, 1
  %vm458 = vcmp.eq.s32.totalorder %v450, 1
  %vm459 = vcmp.eq.s32.totalorder %v451, 1
  %vm460 = vcmp.eq.s32.totalorder %v452, 1
  %v461 = vsel %vm453, 0.0, %v429
  %v462 = vsel %vm453, 0.0, %v430
  %v463 = vsel %vm454, 0.0, %v431
  %v464 = vsel %vm454, 0.0, %v432
  %v465 = vsel %vm455, 0.0, %v433
  %v466 = vsel %vm455, 0.0, %v434
  %v467 = vsel %vm456, 0.0, %v435
  %v468 = vsel %vm456, 0.0, %v436
  %v469 = vsel %vm457, 0.0, %v437
  %v470 = vsel %vm457, 0.0, %v438
  %v471 = vsel %vm458, 0.0, %v439
  %v472 = vsel %vm458, 0.0, %v440
  %v473 = vsel %vm459, 0.0, %v441
  %v474 = vsel %vm459, 0.0, %v442
  %v475 = vsel %vm460, 0.0, %v443
  %v476 = vsel %vm460, 0.0, %v444
  %v477 = vpack.c.bf16 %v463, %v461
  %v478 = vpack.c.bf16 %v464, %v462
  %v479 = vpack.c.bf16 %v467, %v465
  %v480 = vpack.c.bf16 %v468, %v466
  %v481 = vpack.c.bf16 %v471, %v469
  %v482 = vpack.c.bf16 %v472, %v470
  %v483 = vpack.c.bf16 %v475, %v473
  %v484 = vpack.c.bf16 %v476, %v474
  %v485 = vld [vmem:[%s2] sm:$0xf]
  %v486 = vld [vmem:[%s2 + $0x4] sm:$0xf]
  %v487 = vld [vmem:[%s2 + $0x8] sm:$0xf]
  %v488 = vld [vmem:[%s2 + $0xc] sm:$0xf]
  %v489 = vld [vmem:[%s2 + $0x10] sm:$0xf]
  %v490 = vld [vmem:[%s2 + $0x14] sm:$0xf]
  %v491 = vld [vmem:[%s2 + $0x18] sm:$0xf]
  %v492 = vld [vmem:[%s2 + $0x1c] sm:$0xf]
  %v493 = vld [vmem:[%s2 + $0x20] sm:$0xf]
  %v494 = vld [vmem:[%s2 + $0x24] sm:$0xf]
  %v495 = vld [vmem:[%s2 + $0x28] sm:$0xf]
  %v496 = vld [vmem:[%s2 + $0x2c] sm:$0xf]
  %v497 = vld [vmem:[%s2 + $0x30] sm:$0xf]
  %v498 = vld [vmem:[%s2 + $0x34] sm:$0xf]
  %v499 = vld [vmem:[%s2 + $0x38] sm:$0xf]
  %v500 = vld [vmem:[%s2 + $0x3c] sm:$0xf]
  %v501 = vld [vmem:[%s2 + $0x40] sm:$0xf]
  %v502 = vld [vmem:[%s2 + $0x44] sm:$0xf]
  %v503 = vld [vmem:[%s2 + $0x48] sm:$0xf]
  %v504 = vld [vmem:[%s2 + $0x4c] sm:$0xf]
  %v505 = vld [vmem:[%s2 + $0x50] sm:$0xf]
  %v506 = vld [vmem:[%s2 + $0x54] sm:$0xf]
  %v507 = vld [vmem:[%s2 + $0x58] sm:$0xf]
  %v508 = vld [vmem:[%s2 + $0x5c] sm:$0xf]
  %v509 = vld [vmem:[%s2 + $0x60] sm:$0xf]
  %v510 = vld [vmem:[%s2 + $0x64] sm:$0xf]
  %v511 = vld [vmem:[%s2 + $0x68] sm:$0xf]
  %v512 = vld [vmem:[%s2 + $0x6c] sm:$0xf]
  %v513 = vld [vmem:[%s2 + $0x70] sm:$0xf]
  %v514 = vld [vmem:[%s2 + $0x74] sm:$0xf]
  %v515 = vld [vmem:[%s2 + $0x78] sm:$0xf]
  %v516 = vld [vmem:[%s2 + $0x7c] sm:$0xf]
  %v549 = vunpack.c.l.b16 %v485
  %v550 = vunpack.c.l.b16 %v486
  %v551 = vunpack.c.l.b16 %v487
  %v552 = vunpack.c.l.b16 %v488
  %v553 = vunpack.c.l.b16 %v489
  %v554 = vunpack.c.l.b16 %v490
  %v555 = vunpack.c.l.b16 %v491
  %v556 = vunpack.c.l.b16 %v492
  %v557 = vunpack.c.l.b16 %v493
  %v558 = vunpack.c.l.b16 %v494
  %v559 = vunpack.c.l.b16 %v495
  %v560 = vunpack.c.l.b16 %v496
  %v561 = vunpack.c.l.b16 %v497
  %v562 = vunpack.c.l.b16 %v498
  %v563 = vunpack.c.l.b16 %v499
  %v564 = vunpack.c.l.b16 %v500
  %v565 = vunpack.c.l.b16 %v501
  %v566 = vunpack.c.l.b16 %v502
  %v567 = vunpack.c.l.b16 %v503
  %v568 = vunpack.c.l.b16 %v504
  %v569 = vunpack.c.l.b16 %v505
  %v570 = vunpack.c.l.b16 %v506
  %v571 = vunpack.c.l.b16 %v507
  %v572 = vunpack.c.l.b16 %v508
  %v573 = vunpack.c.l.b16 %v509
  %v574 = vunpack.c.l.b16 %v510
  %v575 = vunpack.c.l.b16 %v511
  %v576 = vunpack.c.l.b16 %v512
  %v577 = vunpack.c.l.b16 %v513
  %v578 = vunpack.c.l.b16 %v514
  %v579 = vunpack.c.l.b16 %v515
  %v580 = vunpack.c.l.b16 %v516
  %v581 = vpack.c.b16 %v550, %v549
  %v582 = vpack.c.b16 %v552, %v551
  %v583 = vpack.c.b16 %v554, %v553
  %v584 = vpack.c.b16 %v556, %v555
  %v585 = vpack.c.b16 %v558, %v557
  %v586 = vpack.c.b16 %v560, %v559
  %v587 = vpack.c.b16 %v562, %v561
  %v588 = vpack.c.b16 %v564, %v563
  %v589 = vpack.c.b16 %v566, %v565
  %v590 = vpack.c.b16 %v568, %v567
  %v591 = vpack.c.b16 %v570, %v569
  %v592 = vpack.c.b16 %v572, %v571
  %v593 = vpack.c.b16 %v574, %v573
  %v594 = vpack.c.b16 %v576, %v575
  %v595 = vpack.c.b16 %v578, %v577
  %v596 = vpack.c.b16 %v580, %v579
  %613 = vmatprep.subr.bf16.mxu0 0
  %614 = vmatpush1.bf16.msra.mxu0 %v581
  %615 = vmatprep.subr.bf16.mxu0 0
  %616 = vmatpush1.bf16.msra.mxu0 %v582
  %617 = vmatprep.subr.bf16.mxu0 0
  %618 = vmatpush1.bf16.msra.mxu0 %v583
  %619 = vmatprep.subr.bf16.mxu0 0
  %620 = vmatpush1.bf16.msra.mxu0 %v584
  %621 = vmatprep.subr.bf16.mxu0 0
  %622 = vmatpush1.bf16.msra.mxu0 %v585
  %623 = vmatprep.subr.bf16.mxu0 0
  %624 = vmatpush1.bf16.msra.mxu0 %v586
  %625 = vmatprep.subr.bf16.mxu0 0
  %626 = vmatpush1.bf16.msra.mxu0 %v587
  %627 = vmatprep.subr.bf16.mxu0 0
  %628 = vmatpush1.bf16.msra.mxu0 %v588
  %629 = vmatprep.subr.bf16.mxu0 0
  %630 = vmatpush1.bf16.msra.mxu0 %v589
  %631 = vmatprep.subr.bf16.mxu0 0
  %632 = vmatpush1.bf16.msra.mxu0 %v590
  %633 = vmatprep.subr.bf16.mxu0 0
  %634 = vmatpush1.bf16.msra.mxu0 %v591
  %635 = vmatprep.subr.bf16.mxu0 0
  %636 = vmatpush1.bf16.msra.mxu0 %v592
  %637 = vmatprep.subr.bf16.mxu0 0
  %638 = vmatpush1.bf16.msra.mxu0 %v593
  %639 = vmatprep.subr.bf16.mxu0 0
  %640 = vmatpush1.bf16.msra.mxu0 %v594
  %641 = vmatprep.subr.bf16.mxu0 0
  %642 = vmatpush1.bf16.msra.mxu0 %v595
  %643 = vmatprep.subr.bf16.mxu0 0
  %644 = vmatpush1.bf16.msra.mxu0 %v596
  %645 = vmatprep.mubr.bf16.mxu0 %v478
  %646 = vmatmul.mubr.bf16.gmra.mrb[0].mxu0 %v477
  %v647 = vpop.f32.mrb[0].mxu0
  %v648 = vadd.f32 0.0, %v647
  %v649 = vpop.f32.mrb[0].mxu0
  %v650 = vpop.f32.mrb[0].mxu0
  %v651 = vadd.f32 0.0, %v650
  %v652 = vpop.f32.mrb[0].mxu0
  %653 = vmatprep.mubr.bf16.mxu0 %v480
  %654 = vmatmul.mubr.bf16.gmra.mrb[0].mxu0 %v479
  %v655 = vpop.f32.mrb[0].mxu0
  %v656 = vadd.f32 0.0, %v655
  %v657 = vpop.f32.mrb[0].mxu0
  %v658 = vpop.f32.mrb[0].mxu0
  %v659 = vadd.f32 0.0, %v658
  %v660 = vpop.f32.mrb[0].mxu0
  %661 = vmatprep.mubr.bf16.mxu0 %v482
  %662 = vmatmul.mubr.bf16.gmra.mrb[0].mxu0 %v481
  %v663 = vpop.f32.mrb[0].mxu0
  %v664 = vadd.f32 0.0, %v663
  %v665 = vpop.f32.mrb[0].mxu0
  %v666 = vpop.f32.mrb[0].mxu0
  %v667 = vadd.f32 0.0, %v666
  %v668 = vpop.f32.mrb[0].mxu0
  %669 = vmatprep.mubr.bf16.mxu0 %v484
  %670 = vmatmul.mubr.bf16.gmra.mrb[0].mxu0 %v483
  %v671 = vpop.f32.mrb[0].mxu0
  %v672 = vadd.f32 0.0, %v671
  %v673 = vpop.f32.mrb[0].mxu0
  %v674 = vpop.f32.mrb[0].mxu0
  %v675 = vadd.f32 0.0, %v674
  %v676 = vpop.f32.mrb[0].mxu0
  %677 = vdwg.mxu0
  %v710 = vunpack.c.l.b16 %v293
  %v711 = vunpack.c.l.b16 %v294
  %v712 = vunpack.c.l.b16 %v295
  %v713 = vunpack.c.l.b16 %v296
  %v714 = vunpack.c.l.b16 %v297
  %v715 = vunpack.c.l.b16 %v298
  %v716 = vunpack.c.l.b16 %v299
  %v717 = vunpack.c.l.b16 %v300
  %v718 = vunpack.c.l.b16 %v301
  %v719 = vunpack.c.l.b16 %v302
  %v720 = vunpack.c.l.b16 %v303
  %v721 = vunpack.c.l.b16 %v304
  %v722 = vunpack.c.l.b16 %v305
  %v723 = vunpack.c.l.b16 %v306
  %v724 = vunpack.c.l.b16 %v307
  %v725 = vunpack.c.l.b16 %v308
  %v726 = vunpack.c.l.b16 %v309
  %v727 = vunpack.c.l.b16 %v310
  %v728 = vunpack.c.l.b16 %v311
  %v729 = vunpack.c.l.b16 %v312
  %v730 = vunpack.c.l.b16 %v313
  %v731 = vunpack.c.l.b16 %v314
  %v732 = vunpack.c.l.b16 %v315
  %v733 = vunpack.c.l.b16 %v316
  %v734 = vunpack.c.l.b16 %v317
  %v735 = vunpack.c.l.b16 %v318
  %v736 = vunpack.c.l.b16 %v319
  %v737 = vunpack.c.l.b16 %v320
  %v738 = vunpack.c.l.b16 %v321
  %v739 = vunpack.c.l.b16 %v322
  %v740 = vunpack.c.l.b16 %v323
  %v741 = vunpack.c.l.b16 %v324
  %v742 = vpack.c.b16 %v711, %v710
  %v743 = vpack.c.b16 %v713, %v712
  %v744 = vpack.c.b16 %v715, %v714
  %v745 = vpack.c.b16 %v717, %v716
  %v746 = vpack.c.b16 %v719, %v718
  %v747 = vpack.c.b16 %v721, %v720
  %v748 = vpack.c.b16 %v723, %v722
  %v749 = vpack.c.b16 %v725, %v724
  %v750 = vpack.c.b16 %v727, %v726
  %v751 = vpack.c.b16 %v729, %v728
  %v752 = vpack.c.b16 %v731, %v730
  %v753 = vpack.c.b16 %v733, %v732
  %v754 = vpack.c.b16 %v735, %v734
  %v755 = vpack.c.b16 %v737, %v736
  %v756 = vpack.c.b16 %v739, %v738
  %v757 = vpack.c.b16 %v741, %v740
  %774 = vmatprep.subr.bf16.mxu0 0
  %775 = vmatpush1.bf16.msra.mxu0 %v742
  %776 = vmatprep.subr.bf16.mxu0 0
  %777 = vmatpush1.bf16.msra.mxu0 %v743
  %778 = vmatprep.subr.bf16.mxu0 0
  %779 = vmatpush1.bf16.msra.mxu0 %v744
  %780 = vmatprep.subr.bf16.mxu0 0
  %781 = vmatpush1.bf16.msra.mxu0 %v745
  %782 = vmatprep.subr.bf16.mxu0 0
  %783 = vmatpush1.bf16.msra.mxu0 %v746
  %784 = vmatprep.subr.bf16.mxu0 0
  %785 = vmatpush1.bf16.msra.mxu0 %v747
  %786 = vmatprep.subr.bf16.mxu0 0
  %787 = vmatpush1.bf16.msra.mxu0 %v748
  %788 = vmatprep.subr.bf16.mxu0 0
  %789 = vmatpush1.bf16.msra.mxu0 %v749
  %790 = vmatprep.subr.bf16.mxu0 0
  %791 = vmatpush1.bf16.msra.mxu0 %v750
  %792 = vmatprep.subr.bf16.mxu0 0
  %793 = vmatpush1.bf16.msra.mxu0 %v751
  %794 = vmatprep.subr.bf16.mxu0 0
  %795 = vmatpush1.bf16.msra.mxu0 %v752
  %796 = vmatprep.subr.bf16.mxu0 0
  %797 = vmatpush1.bf16.msra.mxu0 %v753
  %798 = vmatprep.subr.bf16.mxu0 0
  %799 = vmatpush1.bf16.msra.mxu0 %v754
  %800 = vmatprep.subr.bf16.mxu0 0
  %801 = vmatpush1.bf16.msra.mxu0 %v755
  %802 = vmatprep.subr.bf16.mxu0 0
  %803 = vmatpush1.bf16.msra.mxu0 %v756
  %804 = vmatprep.subr.bf16.mxu0 0
  %805 = vmatpush1.bf16.msra.mxu0 %v757
  %806 = vmatprep.mubr.bf16.mxu0 %v193
  %807 = vmatmul.mubr.bf16.gmra.mrb[0].mxu0 %v192
  %v808 = vpop.f32.mrb[0].mxu0
  %v809 = vadd.f32 %v648, %v808
  %v810 = vpop.f32.mrb[0].mxu0
  %v811 = vpop.f32.mrb[0].mxu0
  %v812 = vadd.f32 %v651, %v811
  %v813 = vpop.f32.mrb[0].mxu0
  %814 = vmatprep.mubr.bf16.mxu0 %v195
  %815 = vmatmul.mubr.bf16.gmra.mrb[0].mxu0 %v194
  %v816 = vpop.f32.mrb[0].mxu0
  %v817 = vadd.f32 %v656, %v816
  %v818 = vpop.f32.mrb[0].mxu0
  %v819 = vpop.f32.mrb[0].mxu0
  %v820 = vadd.f32 %v659, %v819
  %v821 = vpop.f32.mrb[0].mxu0
  %822 = vmatprep.mubr.bf16.mxu0 %v197
  %823 = vmatmul.mubr.bf16.gmra.mrb[0].mxu0 %v196
  %v824 = vpop.f32.mrb[0].mxu0
  %v825 = vadd.f32 %v664, %v824
  %v826 = vpop.f32.mrb[0].mxu0
  %v827 = vpop.f32.mrb[0].mxu0
  %v828 = vadd.f32 %v667, %v827
  %v829 = vpop.f32.mrb[0].mxu0
  %830 = vmatprep.mubr.bf16.mxu0 %v199
  %831 = vmatmul.mubr.bf16.gmra.mrb[0].mxu0 %v198
  %v832 = vpop.f32.mrb[0].mxu0
  %v833 = vadd.f32 %v672, %v832
  %v834 = vpop.f32.mrb[0].mxu0
  %v835 = vpop.f32.mrb[0].mxu0
  %v836 = vadd.f32 %v675, %v835
  %v837 = vpop.f32.mrb[0].mxu0
  %838 = vdwg.mxu0
  %vm839 = vcmp.eq.s32.totalorder %v413, 31
  %vm840 = vcmp.eq.s32.totalorder %v414, 31
  %vm841 = vcmp.eq.s32.totalorder %v415, 31
  %vm842 = vcmp.eq.s32.totalorder %v416, 31
  %vm843 = vcmp.eq.s32.totalorder %v417, 31
  %vm844 = vcmp.eq.s32.totalorder %v418, 31
  %vm845 = vcmp.eq.s32.totalorder %v419, 31
  %vm846 = vcmp.eq.s32.totalorder %v420, 31
  %v847 = vld [vmem:[#allocation2] sm:$0xfc]
  %v848 = vld [vmem:[#allocation2 + $0x8] sm:$0xfc]
  %v849 = vld [vmem:[#allocation2 + $0x10] sm:$0xff]
  %v850 = vld [vmem:[#allocation2 + $0x18] sm:$0xff]
  %v851 = vld [vmem:[#allocation2 + $0x20] sm:$0xff]
  %v852 = vld [vmem:[#allocation2 + $0x28] sm:$0xff]
  %v853 = vld [vmem:[#allocation2 + $0x30] sm:$0xff]
  %v854 = vld [vmem:[#allocation2 + $0x38] sm:$0xff]
  %v855 = vld [vmem:[#allocation2 + $0x40] sm:$0xff]
  %v856 = vld [vmem:[#allocation2 + $0x48] sm:$0xff]
  %v857 = vld [vmem:[#allocation2 + $0x50] sm:$0xff]
  %v858 = vld [vmem:[#allocation2 + $0x58] sm:$0xff]
  %v859 = vld [vmem:[#allocation2 + $0x60] sm:$0xff]
  %v860 = vld [vmem:[#allocation2 + $0x68] sm:$0xff]
  %v861 = vld [vmem:[#allocation2 + $0x70] sm:$0xff]
  %v862 = vld [vmem:[#allocation2 + $0x78] sm:$0xff]
  %v863 = vld [vmem:[#allocation2 + $0x80] sm:$0x3]
  %v864 = vld [vmem:[#allocation2 + $0x88] sm:$0x3]
  %v865 = vsel %vm839, 1, 0
  %v866 = vsel %vm840, 1, 0
  %v867 = vsel %vm841, 1, 0
  %v868 = vsel %vm842, 1, 0
  %v869 = vsel %vm843, 1, 0
  %v870 = vsel %vm844, 1, 0
  %v871 = vsel %vm845, 1, 0
  %v872 = vsel %vm846, 1, 0
  %vm873 = vcmp.eq.s32.totalorder %v865, 1
  %vm874 = vcmp.eq.s32.totalorder %v866, 1
  %vm875 = vcmp.eq.s32.totalorder %v867, 1
  %vm876 = vcmp.eq.s32.totalorder %v868, 1
  %vm877 = vcmp.eq.s32.totalorder %v869, 1
  %vm878 = vcmp.eq.s32.totalorder %v870, 1
  %vm879 = vcmp.eq.s32.totalorder %v871, 1
  %vm880 = vcmp.eq.s32.totalorder %v872, 1
  %vm899 = vcmask 1045504
  %v900 = vrot.slane %v847, 2
  %v901 = vrot.slane %v849, 2
  %v902 = vsel %vm899, %v900, %v901
  %v903 = vrot.slane %v848, 2
  %v904 = vrot.slane %v850, 2
  %v905 = vsel %vm899, %v903, %v904
  %v906 = vrot.slane %v851, 2
  %v907 = vsel %vm899, %v901, %v906
  %v908 = vrot.slane %v852, 2
  %v909 = vsel %vm899, %v904, %v908
  %v910 = vrot.slane %v853, 2
  %v911 = vsel %vm899, %v906, %v910
  %v912 = vrot.slane %v854, 2
  %v913 = vsel %vm899, %v908, %v912
  %v914 = vrot.slane %v855, 2
  %v915 = vsel %vm899, %v910, %v914
  %v916 = vrot.slane %v856, 2
  %v917 = vsel %vm899, %v912, %v916
  %v918 = vrot.slane %v857, 2
  %v919 = vsel %vm899, %v914, %v918
  %v920 = vrot.slane %v858, 2
  %v921 = vsel %vm899, %v916, %v920
  %v922 = vrot.slane %v859, 2
  %v923 = vsel %vm899, %v918, %v922
  %v924 = vrot.slane %v860, 2
  %v925 = vsel %vm899, %v920, %v924
  %v926 = vrot.slane %v861, 2
  %v927 = vsel %vm899, %v922, %v926
  %v928 = vrot.slane %v862, 2
  %v929 = vsel %vm899, %v924, %v928
  %v930 = vrot.slane %v863, 2
  %v931 = vsel %vm899, %v926, %v930
  %v932 = vrot.slane %v864, 2
  %v933 = vsel %vm899, %v928, %v932
  %v950 = vsel %vm873, 0.0, %v902
  %v951 = vsel %vm873, 0.0, %v905
  %v952 = vsel %vm874, 0.0, %v907
  %v953 = vsel %vm874, 0.0, %v909
  %v954 = vsel %vm875, 0.0, %v911
  %v955 = vsel %vm875, 0.0, %v913
  %v956 = vsel %vm876, 0.0, %v915
  %v957 = vsel %vm876, 0.0, %v917
  %v958 = vsel %vm877, 0.0, %v919
  %v959 = vsel %vm877, 0.0, %v921
  %v960 = vsel %vm878, 0.0, %v923
  %v961 = vsel %vm878, 0.0, %v925
  %v962 = vsel %vm879, 0.0, %v927
  %v963 = vsel %vm879, 0.0, %v929
  %v964 = vsel %vm880, 0.0, %v931
  %v965 = vsel %vm880, 0.0, %v933
  %v966 = vpack.c.bf16 %v952, %v950
  %v967 = vpack.c.bf16 %v953, %v951
  %v968 = vpack.c.bf16 %v956, %v954
  %v969 = vpack.c.bf16 %v957, %v955
  %v970 = vpack.c.bf16 %v960, %v958
  %v971 = vpack.c.bf16 %v961, %v959
  %v972 = vpack.c.bf16 %v964, %v962
  %v973 = vpack.c.bf16 %v965, %v963
  %s974 = scalar_lea.vmem %s2, 256
  %v975 = vld [vmem:[%s974] sm:$0xf]
  %v976 = vld [vmem:[%s974 + $0x4] sm:$0xf]
  %v977 = vld [vmem:[%s974 + $0x8] sm:$0xf]
  %v978 = vld [vmem:[%s974 + $0xc] sm:$0xf]
  %v979 = vld [vmem:[%s974 + $0x10] sm:$0xf]
  %v980 = vld [vmem:[%s974 + $0x14] sm:$0xf]
  %v981 = vld [vmem:[%s974 + $0x18] sm:$0xf]
  %v982 = vld [vmem:[%s974 + $0x1c] sm:$0xf]
  %v983 = vld [vmem:[%s974 + $0x20] sm:$0xf]
  %v984 = vld [vmem:[%s974 + $0x24] sm:$0xf]
  %v985 = vld [vmem:[%s974 + $0x28] sm:$0xf]
  %v986 = vld [vmem:[%s974 + $0x2c] sm:$0xf]
  %v987 = vld [vmem:[%s974 + $0x30] sm:$0xf]
  %v988 = vld [vmem:[%s974 + $0x34] sm:$0xf]
  %v989 = vld [vmem:[%s974 + $0x38] sm:$0xf]
  %v990 = vld [vmem:[%s974 + $0x3c] sm:$0xf]
  %v991 = vld [vmem:[%s974 + $0x40] sm:$0xf]
  %v992 = vld [vmem:[%s974 + $0x44] sm:$0xf]
  %v993 = vld [vmem:[%s974 + $0x48] sm:$0xf]
  %v994 = vld [vmem:[%s974 + $0x4c] sm:$0xf]
  %v995 = vld [vmem:[%s974 + $0x50] sm:$0xf]
  %v996 = vld [vmem:[%s974 + $0x54] sm:$0xf]
  %v997 = vld [vmem:[%s974 + $0x58] sm:$0xf]
  %v998 = vld [vmem:[%s974 + $0x5c] sm:$0xf]
  %v999 = vld [vmem:[%s974 + $0x60] sm:$0xf]
  %v1000 = vld [vmem:[%s974 + $0x64] sm:$0xf]
  %v1001 = vld [vmem:[%s974 + $0x68] sm:$0xf]
  %v1002 = vld [vmem:[%s974 + $0x6c] sm:$0xf]
  %v1003 = vld [vmem:[%s974 + $0x70] sm:$0xf]
  %v1004 = vld [vmem:[%s974 + $0x74] sm:$0xf]
  %v1005 = vld [vmem:[%s974 + $0x78] sm:$0xf]
  %v1006 = vld [vmem:[%s974 + $0x7c] sm:$0xf]
  %v1039 = vunpack.c.l.b16 %v975
  %v1040 = vunpack.c.l.b16 %v976
  %v1041 = vunpack.c.l.b16 %v977
  %v1042 = vunpack.c.l.b16 %v978
  %v1043 = vunpack.c.l.b16 %v979
  %v1044 = vunpack.c.l.b16 %v980
  %v1045 = vunpack.c.l.b16 %v981
  %v1046 = vunpack.c.l.b16 %v982
  %v1047 = vunpack.c.l.b16 %v983
  %v1048 = vunpack.c.l.b16 %v984
  %v1049 = vunpack.c.l.b16 %v985
  %v1050 = vunpack.c.l.b16 %v986
  %v1051 = vunpack.c.l.b16 %v987
  %v1052 = vunpack.c.l.b16 %v988
  %v1053 = vunpack.c.l.b16 %v989
  %v1054 = vunpack.c.l.b16 %v990
  %v1055 = vunpack.c.l.b16 %v991
  %v1056 = vunpack.c.l.b16 %v992
  %v1057 = vunpack.c.l.b16 %v993
  %v1058 = vunpack.c.l.b16 %v994
  %v1059 = vunpack.c.l.b16 %v995
  %v1060 = vunpack.c.l.b16 %v996
  %v1061 = vunpack.c.l.b16 %v997
  %v1062 = vunpack.c.l.b16 %v998
  %v1063 = vunpack.c.l.b16 %v999
  %v1064 = vunpack.c.l.b16 %v1000
  %v1065 = vunpack.c.l.b16 %v1001
  %v1066 = vunpack.c.l.b16 %v1002
  %v1067 = vunpack.c.l.b16 %v1003
  %v1068 = vunpack.c.l.b16 %v1004
  %v1069 = vunpack.c.l.b16 %v1005
  %v1070 = vunpack.c.l.b16 %v1006
  %v1071 = vpack.c.b16 %v1040, %v1039
  %v1072 = vpack.c.b16 %v1042, %v1041
  %v1073 = vpack.c.b16 %v1044, %v1043
  %v1074 = vpack.c.b16 %v1046, %v1045
  %v1075 = vpack.c.b16 %v1048, %v1047
  %v1076 = vpack.c.b16 %v1050, %v1049
  %v1077 = vpack.c.b16 %v1052, %v1051
  %v1078 = vpack.c.b16 %v1054, %v1053
  %v1079 = vpack.c.b16 %v1056, %v1055
  %v1080 = vpack.c.b16 %v1058, %v1057
  %v1081 = vpack.c.b16 %v1060, %v1059
  %v1082 = vpack.c.b16 %v1062, %v1061
  %v1083 = vpack.c.b16 %v1064, %v1063
  %v1084 = vpack.c.b16 %v1066, %v1065
  %v1085 = vpack.c.b16 %v1068, %v1067
  %v1086 = vpack.c.b16 %v1070, %v1069
  %1103 = vmatprep.subr.bf16.mxu0 0
  %1104 = vmatpush1.bf16.msra.mxu0 %v1071
  %1105 = vmatprep.subr.bf16.mxu0 0
  %1106 = vmatpush1.bf16.msra.mxu0 %v1072
  %1107 = vmatprep.subr.bf16.mxu0 0
  %1108 = vmatpush1.bf16.msra.mxu0 %v1073
  %1109 = vmatprep.subr.bf16.mxu0 0
  %1110 = vmatpush1.bf16.msra.mxu0 %v1074
  %1111 = vmatprep.subr.bf16.mxu0 0
  %1112 = vmatpush1.bf16.msra.mxu0 %v1075
  %1113 = vmatprep.subr.bf16.mxu0 0
  %1114 = vmatpush1.bf16.msra.mxu0 %v1076
  %1115 = vmatprep.subr.bf16.mxu0 0
  %1116 = vmatpush1.bf16.msra.mxu0 %v1077
  %1117 = vmatprep.subr.bf16.mxu0 0
  %1118 = vmatpush1.bf16.msra.mxu0 %v1078
  %1119 = vmatprep.subr.bf16.mxu0 0
  %1120 = vmatpush1.bf16.msra.mxu0 %v1079
  %1121 = vmatprep.subr.bf16.mxu0 0
  %1122 = vmatpush1.bf16.msra.mxu0 %v1080
  %1123 = vmatprep.subr.bf16.mxu0 0
  %1124 = vmatpush1.bf16.msra.mxu0 %v1081
  %1125 = vmatprep.subr.bf16.mxu0 0
  %1126 = vmatpush1.bf16.msra.mxu0 %v1082
  %1127 = vmatprep.subr.bf16.mxu0 0
  %1128 = vmatpush1.bf16.msra.mxu0 %v1083
  %1129 = vmatprep.subr.bf16.mxu0 0
  %1130 = vmatpush1.bf16.msra.mxu0 %v1084
  %1131 = vmatprep.subr.bf16.mxu0 0
  %1132 = vmatpush1.bf16.msra.mxu0 %v1085
  %1133 = vmatprep.subr.bf16.mxu0 0
  %1134 = vmatpush1.bf16.msra.mxu0 %v1086
  %1135 = vmatprep.mubr.bf16.mxu0 %v967
  %1136 = vmatmul.mubr.bf16.gmra.mrb[0].mxu0 %v966
  %v1137 = vpop.f32.mrb[0].mxu0
  %v1138 = vadd.f32 0.0, %v1137
  %v1139 = vpop.f32.mrb[0].mxu0
  %v1140 = vpop.f32.mrb[0].mxu0
  %v1141 = vadd.f32 0.0, %v1140
  %v1142 = vpop.f32.mrb[0].mxu0
  %1143 = vmatprep.mubr.bf16.mxu0 %v969
  %1144 = vmatmul.mubr.bf16.gmra.mrb[0].mxu0 %v968
  %v1145 = vpop.f32.mrb[0].mxu0
  %v1146 = vadd.f32 0.0, %v1145
  %v1147 = vpop.f32.mrb[0].mxu0
  %v1148 = vpop.f32.mrb[0].mxu0
  %v1149 = vadd.f32 0.0, %v1148
  %v1150 = vpop.f32.mrb[0].mxu0
  %1151 = vmatprep.mubr.bf16.mxu0 %v971
  %1152 = vmatmul.mubr.bf16.gmra.mrb[0].mxu0 %v970
  %v1153 = vpop.f32.mrb[0].mxu0
  %v1154 = vadd.f32 0.0, %v1153
  %v1155 = vpop.f32.mrb[0].mxu0
  %v1156 = vpop.f32.mrb[0].mxu0
  %v1157 = vadd.f32 0.0, %v1156
  %v1158 = vpop.f32.mrb[0].mxu0
  %1159 = vmatprep.mubr.bf16.mxu0 %v973
  %1160 = vmatmul.mubr.bf16.gmra.mrb[0].mxu0 %v972
  %v1161 = vpop.f32.mrb[0].mxu0
  %v1162 = vadd.f32 0.0, %v1161
  %v1163 = vpop.f32.mrb[0].mxu0
  %v1164 = vpop.f32.mrb[0].mxu0
  %v1165 = vadd.f32 0.0, %v1164
  %v1166 = vpop.f32.mrb[0].mxu0
  %1167 = vdwg.mxu0
  %v1168 = vadd.f32 %v809, %v1138
  %v1169 = vadd.f32 %v812, %v1141
  %v1170 = vadd.f32 %v817, %v1146
  %v1171 = vadd.f32 %v820, %v1149
  %v1172 = vadd.f32 %v825, %v1154
  %v1173 = vadd.f32 %v828, %v1157
  %v1174 = vadd.f32 %v833, %v1162
  %v1175 = vadd.f32 %v836, %v1165
  %v1176 = vld [vmem:[%s3] sm:$0x1]
  %v1178 = vlaneseq
  %v1179 = vshrl.u32 %v1178, 7
  %v1180 = vsub.s32 0, %v1179
  %v1181 = vrot.slane %v1176, %v1180
  %v1183 = vadd.f32 %v1168, %v1181
  %v1184 = vadd.f32 %v1169, %v1181
  %v1185 = vadd.f32 %v1170, %v1181
  %v1186 = vadd.f32 %v1171, %v1181
  %v1187 = vadd.f32 %v1172, %v1181
  %v1188 = vadd.f32 %v1173, %v1181
  %v1189 = vadd.f32 %v1174, %v1181
  %v1190 = vadd.f32 %v1175, %v1181
  %1191 = vst [vmem:[%s4] sm:$0xff] %v1183
  %1192 = vst [vmem:[%s4 + $0x8] sm:$0xff] %v1184
  %1193 = vst [vmem:[%s4 + $0x10] sm:$0xff] %v1185
  %1194 = vst [vmem:[%s4 + $0x18] sm:$0xff] %v1186
  %1195 = vst [vmem:[%s4 + $0x20] sm:$0xff] %v1187
  %1196 = vst [vmem:[%s4 + $0x28] sm:$0xff] %v1188
  %1197 = vst [vmem:[%s4 + $0x30] sm:$0xff] %v1189
  %1198 = vst [vmem:[%s4 + $0x38] sm:$0xff] %v1190
  // Predicated region
  $region18: #{up_forward.5} parent=0 // pred_check
    _
  $region19: #{up_forward.5} parent=0 // pred_check_branch
    %1200 = sbr.rel (0) target = $region21
  $region20: #{up_forward.5} parent=0 // pred_region
    _
  $region21: #{up_forward.5} parent=0 // pred_fallthru
    _
  // Predicated region
  $region22: #{up_forward.5} parent=0 // pred_check
    _
  $region23: #{up_forward.5} parent=0 // pred_check_branch
    %1202 = sbr.rel (0) target = $region25
  $region24: #{up_forward.5} parent=0 // pred_region
    _
  $region25: #{up_forward.5} parent=0 // pred_fallthru
    _

</llo_original>
